<compile_context>
chip_gen: v7x
topology: tpu7x:2x2x1
jax: 0.10.0
libtpu: 0.0.40
codegen_flags: <defaults>
</compile_context>

<pallas_src>
import functools

import numpy as np

import jax
import jax.numpy as jnp
from jax.experimental import pallas as pl
from jax.experimental.pallas import tpu as pltpu


def _round_up(x, m):
    return ((x + m - 1) // m) * m


def _vmem_budget():
    """Generation-aware (resident-h decision budget, vmem_limit cap) in bytes."""
    try:
        cap = int(pltpu.get_tpu_info().vmem_capacity_bytes)
    except Exception:
        cap = 64 * 1024 * 1024              # conservative: assume 64 MiB / core
    if cap <= 64 * 1024 * 1024:             # v7x-class: 64 MiB per TensorCore
        return 30 * 1024 * 1024, 48 * 1024 * 1024
    return 56 * 1024 * 1024, 80 * 1024 * 1024   # v5e / v6e: 128 MiB physical


# ---------------------------------------------------------------------------
# Path 1: all L propagation layers fused into ONE pallas_call (resident h).
#   grid = (n_layers, n_row_tiles).  h_l is kept in bf16 VMEM ping-pong
#   scratch, the running layer sum in an f32 VMEM scratch; only adjacency
#   row-stripes stream from HBM each layer.  The mean (1/(L+1)) is folded
#   into the final-layer epilogue.
# ---------------------------------------------------------------------------
def _fused_propagate_kernel(emb_ref, adj_ref, out_ref, h_a, h_b, acc_ref, *,
                            inv):
    l = pl.program_id(0)                 # layer index
    i = pl.program_id(1)                 # row tile index
    n_layers = pl.num_programs(0)
    tm = adj_ref.shape[0]
    row = pl.multiple_of(i * tm, 128)

    # Load h_0 = embeds (bf16) into ping-pong slot A before the first matmul.
    @pl.when(jnp.logical_and(l == 0, i == 0))
    def _():
        h_a[...] = emb_ref[...].astype(h_a.dtype)

    def _accumulate(h_next):
        # acc = h_0 + h_1 + ...  (initialized from the f32 embeddings at l==0)
        @pl.when(l == 0)
        def _():
            acc_ref[pl.ds(row, tm), :] = emb_ref[pl.ds(row, tm), :] + h_next

        @pl.when(l > 0)
        def _():
            acc_ref[pl.ds(row, tm), :] = acc_ref[pl.ds(row, tm), :] + h_next

        # Final layer: write mean(h_0..h_L) for this row tile.
        @pl.when(l == n_layers - 1)
        def _():
            out_ref[...] = acc_ref[pl.ds(row, tm), :] * inv

    # Even layers read slot A and write slot B; odd layers the reverse.
    @pl.when(l % 2 == 0)
    def _():
        h_next = jnp.dot(adj_ref[...], h_a[...],
                         preferred_element_type=jnp.float32)
        h_b[pl.ds(row, tm), :] = h_next.astype(h_b.dtype)
        _accumulate(h_next)

    @pl.when(l % 2 == 1)
    def _():
        h_next = jnp.dot(adj_ref[...], h_b[...],
                         preferred_element_type=jnp.float32)
        h_a[pl.ds(row, tm), :] = h_next.astype(h_a.dtype)
        _accumulate(h_next)


def _fused_propagate(adj_bf16, emb_f32, n_layers, tm, inv, vmem_limit):
    np_, dp = emb_f32.shape
    kernel = functools.partial(_fused_propagate_kernel, inv=float(inv))
    return pl.pallas_call(
        kernel,
        out_shape=jax.ShapeDtypeStruct((np_, dp), jnp.float32),
        grid_spec=pltpu.PrefetchScalarGridSpec(
            num_scalar_prefetch=0,
            grid=(n_layers, np_ // tm),
            in_specs=[
                pl.BlockSpec((np_, dp), lambda l, i: (0, 0)),   # embeds (resident)
                pl.BlockSpec((tm, np_), lambda l, i: (i, 0)),   # adj row stripe
            ],
            out_specs=pl.BlockSpec((tm, dp), lambda l, i: (i, 0)),
            scratch_shapes=[
                pltpu.VMEM((np_, dp), jnp.bfloat16),   # h ping-pong slot A
                pltpu.VMEM((np_, dp), jnp.bfloat16),   # h ping-pong slot B
                pltpu.VMEM((np_, dp), jnp.float32),    # running layer sum
            ],
        ),
        # h / acc live in VMEM scratch shared across row tiles and layers, so
        # both grid axes must run sequentially on one core.
        compiler_params=pltpu.CompilerParams(
            dimension_semantics=("arbitrary", "arbitrary"),
            vmem_limit_bytes=int(vmem_limit)),
    )(emb_f32, adj_bf16)


def _plan_fused(n, d, budget):
    """Return (np_, tm, vmem_need) for the fused resident-h path, or None."""
    dp = _round_up(d, 128)
    np_ = _round_up(n, 128)
    fixed = (2 * np_ * dp * 4            # f32 embeds input (double-buffered)
             + 2 * np_ * dp * 2          # two bf16 h ping-pong scratch buffers
             + np_ * dp * 4)             # f32 running-sum scratch
    for tm in (1024, 512, 256, 128):
        if np_ % tm:
            continue
        need = fixed + 2 * tm * np_ * 2 + 2 * tm * dp * 4   # adj + out tiles
        if need <= budget:
            return np_, tm, need
    return None


# ---------------------------------------------------------------------------
# Path 2 (fallback when h does not fit VMEM): per-layer block-sparse SpMM.
#   grid = (row_tiles, max_nnz_blocks).  Scalar-prefetched per-row-tile lists
#   of nonzero column blocks drive the adj/h index_maps; all-zero blocks are
#   never fetched and their matmuls are skipped.  f32 accumulation happens in
#   a VMEM scratch; the epilogue emits h_{l+1} in bf16 plus the running layer
#   sum (scaled by 1/(L+1) on the final layer).
# ---------------------------------------------------------------------------
def _spmm_sparse_kernel(bids_ref, cnts_ref, adj_ref, h_ref, acc_in_ref,
                        h_new_ref, acc_out_ref, acc_scr, *, scale):
    i = pl.program_id(0)
    k = pl.program_id(1)
    cnt = cnts_ref[i]

    @pl.when(k == 0)
    def _():
        acc_scr[...] = jnp.zeros_like(acc_scr)

    @pl.when(k < cnt)
    def _():
        acc_scr[...] += jnp.dot(adj_ref[...], h_ref[...],
                                preferred_element_type=jnp.float32)

    @pl.when(k == pl.num_programs(1) - 1)
    def _():
        h_new = acc_scr[...]
        h_new_ref[...] = h_new.astype(h_new_ref.dtype)
        acc = acc_in_ref[...] + h_new
        if scale != 1.0:
            acc = acc * scale
        acc_out_ref[...] = acc


def _spmm_layer_sparse(bids, cnts, adj_bf16, h_bf16, acc_in, *, scale, tm, tk,
                       max_blocks, vmem_limit):
    np_ = adj_bf16.shape[0]
    dp = h_bf16.shape[1]
    mb = int(max_blocks)

    def adj_map(i, k, bids_ref, cnts_ref):
        return (i, bids_ref[i * mb + k])

    def h_map(i, k, bids_ref, cnts_ref):
        return (bids_ref[i * mb + k], 0)

    def row_map(i, k, bids_ref, cnts_ref):
        return (i, 0)

    kernel = functools.partial(_spmm_sparse_kernel, scale=float(scale))
    return pl.pallas_call(
        kernel,
        out_shape=(jax.ShapeDtypeStruct((np_, dp), jnp.bfloat16),   # h_{l+1}
                   jax.ShapeDtypeStruct((np_, dp), jnp.float32)),   # layer sum
        grid_spec=pltpu.PrefetchScalarGridSpec(
            num_scalar_prefetch=2,
            grid=(np_ // tm, mb),
            in_specs=[
                pl.BlockSpec((tm, tk), adj_map),     # adj nonzero block (bf16)
                pl.BlockSpec((tk, dp), h_map),       # matching h block (bf16)
                pl.BlockSpec((tm, dp), row_map),     # running sum in (f32)
            ],
            out_specs=[
                pl.BlockSpec((tm, dp), row_map),
                pl.BlockSpec((tm, dp), row_map),
            ],
            scratch_shapes=[pltpu.VMEM((tm, dp), jnp.float32)],
        ),
        compiler_params=pltpu.CompilerParams(
            dimension_semantics=("parallel", "arbitrary"),
            vmem_limit_bytes=int(vmem_limit)),
    )(bids, cnts, adj_bf16, h_bf16, acc_in)


def _block_structure(adj_padded_np, tm, tk):
    """Per-row-tile lists of nonzero (tm, tk) column blocks (host side)."""
    np_ = adj_padded_np.shape[0]
    nrt, nkb = np_ // tm, np_ // tk
    nz = (np.asarray(adj_padded_np) != 0).reshape(nrt, tm, nkb, tk).any(axis=(1, 3))
    cnts = nz.sum(axis=1).astype(np.int32)
    mb = max(int(cnts.max()), 1)
    bids = np.zeros((nrt, mb), np.int32)
    for r in range(nrt):
        ids = np.flatnonzero(nz[r]).astype(np.int32)
        if ids.size:
            bids[r, :ids.size] = ids
            bids[r, ids.size:] = ids[-1]   # repeat last id -> padded steps cost no DMA
    return bids.reshape(-1), cnts, mb


# ---------------------------------------------------------------------------
# Pairwise scores: 1 + 4*sigmoid(sum(hu*hv)), lane-dense output, batch-tiled.
# ---------------------------------------------------------------------------
def _score_kernel(hu_ref, hv_ref, o_ref):
    s = jnp.sum(hu_ref[...] * hv_ref[...], axis=0)
    o_ref[...] = (1.0 + 4.0 * jax.nn.sigmoid(s))[None, :]


def score(h, u_idx, v_idx):
    b = int(u_idx.shape[0])
    d = int(h.shape[1])
    tb = 1024
    if b <= tb:
        bp = _round_up(max(b, 1), 128)
        tb = bp
    else:
        bp = _round_up(b, tb)
    # Row gather in plain JAX (B is tiny); transpose so the reduction axis (D)
    # sits on sublanes and the batch lands lane-dense in the output.
    hu_t = jnp.pad(h[u_idx].T, ((0, 0), (0, bp - b)))
    hv_t = jnp.pad(h[v_idx].T, ((0, 0), (0, bp - b)))
    out = pl.pallas_call(
        _score_kernel,
        out_shape=jax.ShapeDtypeStruct((1, bp), jnp.float32),
        grid=(bp // tb,),
        in_specs=[pl.BlockSpec((d, tb), lambda j: (0, j)),
                  pl.BlockSpec((d, tb), lambda j: (0, j))],
        out_specs=pl.BlockSpec((1, tb), lambda j: (0, j)),
    )(hu_t, hv_t)
    return out[0, :b]


# ---------------------------------------------------------------------------
# LightGCN wrapper (inference forward pass)
# ---------------------------------------------------------------------------
class LightGCNPallas:
    def __init__(self, n_layers, dropout, initial_embeds,
                 force_tiled=False, tile_m=None, tile_k=None):
        self.n_layers = int(n_layers)
        # TODO(synk): nn.Dropout only acts in training mode; the inference
        # forward (self.training == False) applies no dropout, so it is omitted.
        self.dropout = dropout
        self.embeds = jnp.asarray(initial_embeds, jnp.float32)
        self._force_tiled = bool(force_tiled)
        self._tile_m = tile_m
        self._tile_k = tile_k
        self._cache_adj = None
        self._cache = None

    # One-time (cached) adjacency preprocessing: pad + cast to bf16 on the
    # host, pick the execution plan, and build the nonzero-block lists.
    def _prepare(self, adj):
        if self._cache is not None and self._cache_adj is adj:
            return self._cache
        n, d = self.embeds.shape
        dp = _round_up(d, 128)
        budget, limit_cap = _vmem_budget()

        adj_np = np.asarray(jax.device_get(adj), dtype=np.float32)
        emb_np = np.asarray(jax.device_get(self.embeds), dtype=np.float32)

        plan = None if self._force_tiled else _plan_fused(n, d, budget)
        if plan is not None:
            np_, tm, need = plan
            cache = dict(mode="fused", tm=tm)
        else:
            tm = int(self._tile_m or 512)
            tk = int(self._tile_k or 1024)
            assert max(tm, tk) % min(tm, tk) == 0
            np_ = _round_up(n, max(tm, tk))
            need = (2 * tm * tk * 2 + 2 * tk * dp * 2 + 2 * tm * dp * 4
                    + 2 * tm * dp * 2 + 2 * tm * dp * 4 + tm * dp * 4)
            cache = dict(mode="tiled", tm=tm, tk=tk)

        adj_b = np.zeros((np_, np_), dtype=jnp.bfloat16)   # cast before padding
        adj_b[:n, :n] = adj_np.astype(jnp.bfloat16)
        emb_p = np.zeros((np_, dp), dtype=np.float32)
        emb_p[:n, :d] = emb_np

        cache["adj_bf16"] = jnp.asarray(adj_b)
        cache["emb_f32"] = jnp.asarray(emb_p)
        cache["vmem_limit"] = int(min(limit_cap,
                                      max(int(need * 1.5) + (4 << 20), 32 << 20)))
        if cache["mode"] == "tiled":
            bids, cnts, mb = _block_structure(adj_b, cache["tm"], cache["tk"])
            cache["bids"] = jnp.asarray(bids)
            cache["cnts"] = jnp.asarray(cnts)
            cache["max_blocks"] = mb
            cache["emb_bf16"] = jnp.asarray(emb_p.astype(jnp.bfloat16))

        self._cache_adj = adj
        self._cache = cache
        return cache

    def propagate(self, adj):
        if self.n_layers == 0:
            return self.embeds
        c = self._prepare(adj)
        inv = 1.0 / (self.n_layers + 1)
        if c["mode"] == "fused":
            return _fused_propagate(c["adj_bf16"], c["emb_f32"], self.n_layers,
                                    c["tm"], inv, c["vmem_limit"])
        h = c["emb_bf16"]
        acc = c["emb_f32"]
        for layer in range(self.n_layers):
            last = layer == self.n_layers - 1
            h, acc = _spmm_layer_sparse(
                c["bids"], c["cnts"], c["adj_bf16"], h, acc,
                scale=inv if last else 1.0, tm=c["tm"], tk=c["tk"],
                max_blocks=c["max_blocks"], vmem_limit=c["vmem_limit"])
        return acc   # == mean(h_0..h_L); padded rows/cols are zero

    def forward(self, adj, u_idx, v_idx):
        h = self.propagate(adj)
        return score(h, u_idx, v_idx)

    __call__ = forward


# ---------------------------------------------------------------------------
# Pure-JAX reference for correctness check
# ---------------------------------------------------------------------------
def reference(embeds, adj, u_idx, v_idx, n_layers):
    h = embeds
    embs = [h]
    for _ in range(n_layers):
        h = adj @ h
        embs.append(h)
    h = jnp.mean(jnp.stack(embs, axis=0), axis=0)
    s = jnp.sum(h[u_idx] * h[v_idx], axis=1)
    return 1.0 + 4.0 * jax.nn.sigmoid(s)


def _make_norm_adj(a):
    a = jnp.maximum(a, a.T)
    a = a * (1.0 - jnp.eye(a.shape[0], dtype=a.dtype))
    deg = jnp.clip(a.sum(axis=1), 1.0, None)
    dinv = 1.0 / jnp.sqrt(deg)
    return (a * dinv[:, None]) * dinv[None, :]


if __name__ == "__main__":
    key = jax.random.PRNGKey(0)
    (k_emb, k_adj, k_u, k_v,
     k_emb2, k_adj2, k_u2, k_v2) = jax.random.split(key, 8)

    # ---- Test 1: fused resident-h path (N=256, D=128, 2 layers) -----------
    N, D, B, L = 256, 128, 8, 2
    embeds = (0.1 * jax.random.normal(k_emb, (N, D))).astype(jnp.float32)
    a = (jax.random.uniform(k_adj, (N, N)) < 0.05).astype(jnp.float32)
    adj = _make_norm_adj(a)
    u_idx = jax.random.randint(k_u, (B,), 0, N)
    v_idx = jax.random.randint(k_v, (B,), 0, N)

    model = LightGCNPallas(n_layers=L, dropout=0.1, initial_embeds=embeds)
    out = jax.block_until_ready(model.forward(adj, u_idx, v_idx))
    out_again = jax.block_until_ready(model.forward(adj, u_idx, v_idx))  # cached adj
    ref = reference(embeds, adj, u_idx, v_idx, L)
    assert out.shape == (B,)
    # bf16 MXU inputs (f32 accumulation) -> relaxed tolerance vs. f32 reference.
    assert jnp.allclose(out, ref, atol=3e-2, rtol=3e-2), (out, ref)
    assert jnp.allclose(out, out_again), "cached-adjacency path diverged"

    # ---- Test 2: tiled block-sparse fallback (banded adjacency, 3 layers) --
    N2, D2, B2, L2 = 512, 128, 16, 3
    embeds2 = (0.1 * jax.random.normal(k_emb2, (N2, D2))).astype(jnp.float32)
    idx = jnp.arange(N2)
    band = jnp.abs(idx[:, None] - idx[None, :]) <= 64
    a2 = jnp.where(band & (jax.random.uniform(k_adj2, (N2, N2)) < 0.2), 1.0, 0.0)
    adj2 = _make_norm_adj(a2.astype(jnp.float32))
    u2 = jax.random.randint(k_u2, (B2,), 0, N2)
    v2 = jax.random.randint(k_v2, (B2,), 0, N2)

    model2 = LightGCNPallas(n_layers=L2, dropout=0.0, initial_embeds=embeds2,
                            force_tiled=True, tile_m=128, tile_k=128)
    out2 = jax.block_until_ready(model2.forward(adj2, u2, v2))
    ref2 = reference(embeds2, adj2, u2, v2, L2)
    assert out2.shape == (B2,)
    assert jnp.allclose(out2, ref2, atol=5e-2, rtol=5e-2), (out2, ref2)

    print("KERNEL_OK")
</pallas_src>

<mosaic_0001>
module attributes {stable_mosaic.version = 11 : i64} {
  func.func @_fused_propagate_kernel(%arg0: i32, %arg1: i32, %arg2: memref<256x128xf32, #tpu.memory_space<vmem>>, %arg3: memref<256x256xbf16, #tpu.memory_space<vmem>>, %arg4: memref<256x128xf32, #tpu.memory_space<vmem>>, %arg5: memref<256x128xbf16, #tpu.memory_space<vmem>>, %arg6: memref<256x128xbf16, #tpu.memory_space<vmem>>, %arg7: memref<256x128xf32, #tpu.memory_space<vmem>>) attributes {dimension_semantics = [#tpu.dimension_semantics<arbitrary>, #tpu.dimension_semantics<arbitrary>], iteration_bounds = array<i64: 2, 1>, scalar_prefetch = 0 : i64, scratch_operands = 3 : i64, tpu.core_type = #tpu.core_type<tc>, window_params = [{pipeline_mode = #tpu.pipeline_mode<synchronous>, transform_indices = @transform_0, window_bounds = array<i64: 256, 128>}, {transform_indices = @transform_1, window_bounds = array<i64: 256, 256>}, {transform_indices = @transform_2, window_bounds = array<i64: 256, 128>}]} {
    %c256_i32 = arith.constant 256 : i32
    %0 = arith.muli %arg1, %c256_i32 : i32
    %1 = tpu.assume_multiple %0, 128 : i32
    %c0_i32 = arith.constant 0 : i32
    %2 = arith.cmpi eq, %arg0, %c0_i32 : i32
    %c0_i32_0 = arith.constant 0 : i32
    %3 = arith.cmpi eq, %arg1, %c0_i32_0 : i32
    %4 = arith.andi %2, %3 : i1
    %5 = arith.extui %4 : i1 to i32
    %c0_i32_1 = arith.constant 0 : i32
    %6 = arith.cmpi ne, %5, %c0_i32_1 : i32
    scf.if %6 {
      %c0 = arith.constant 0 : index
      %c0_16 = arith.constant 0 : index
      %33 = vector.load %arg2[%c0, %c0_16] : memref<256x128xf32, #tpu.memory_space<vmem>>, vector<256x128xf32>
      %34 = arith.truncf %33 : vector<256x128xf32> to vector<256x128xbf16>
      %c0_17 = arith.constant 0 : index
      %c0_18 = arith.constant 0 : index
      %35 = vector.load %arg5[%c0_17, %c0_18] : memref<256x128xbf16, #tpu.memory_space<vmem>>, vector<256x128xbf16>
      tpu.vector_store %arg5[%c0_17, %c0_18], %34 {strides = array<i32>} : memref<256x128xbf16, #tpu.memory_space<vmem>>, vector<256x128xbf16>,
    } else {
    }
    %c2_i32 = arith.constant 2 : i32
    %c0_i32_2 = arith.constant 0 : i32
    %7 = arith.cmpi eq, %c2_i32, %c0_i32_2 : i32
    %c1_i32 = arith.constant 1 : i32
    %8 = arith.select %7, %c1_i32, %c2_i32 : i32
    %9 = arith.remsi %arg0, %8 : i32
    %c0_i32_3 = arith.constant 0 : i32
    %10 = arith.cmpi ne, %9, %c0_i32_3 : i32
    %c0_i32_4 = arith.constant 0 : i32
    %11 = arith.cmpi slt, %9, %c0_i32_4 : i32
    %c0_i32_5 = arith.constant 0 : i32
    %12 = arith.cmpi slt, %8, %c0_i32_5 : i32
    %13 = arith.xori %11, %12 : i1
    %14 = arith.andi %13, %10 : i1
    %15 = arith.addi %9, %8 : i32
    %16 = arith.select %14, %15, %9 : i32
    %c0_i32_6 = arith.constant 0 : i32
    %17 = arith.cmpi eq, %16, %c0_i32_6 : i32
    %18 = arith.extui %17 : i1 to i32
    %c0_i32_7 = arith.constant 0 : i32
    %19 = arith.cmpi ne, %18, %c0_i32_7 : i32
    scf.if %19 {
      %c0 = arith.constant 0 : index
      %c0_16 = arith.constant 0 : index
      %33 = vector.load %arg3[%c0, %c0_16] : memref<256x256xbf16, #tpu.memory_space<vmem>>, vector<256x256xbf16>
      %c0_17 = arith.constant 0 : index
      %c0_18 = arith.constant 0 : index
      %34 = vector.load %arg5[%c0_17, %c0_18] : memref<256x128xbf16, #tpu.memory_space<vmem>>, vector<256x128xbf16>
      %cst = arith.constant dense<0.000000e+00> : vector<256x128xf32>
      %35 = tpu.matmul %33, %34, %cst {dimension_numbers = #tpu.dot_dimension_numbers<[1], [0], [0], [1], [0, 0, 1, 1], [], []>} : vector<256x256xbf16>, vector<256x128xbf16>, vector<256x128xf32> -> vector<256x128xf32>
      %36 = arith.truncf %35 : vector<256x128xf32> to vector<256x128xbf16>
      %37 = arith.index_cast %1 : i32 to index
      %c0_19 = arith.constant 0 : index
      %38 = vector.load %arg6[%37, %c0_19] : memref<256x128xbf16, #tpu.memory_space<vmem>>, vector<256x128xbf16>
      tpu.vector_store %arg6[%37, %c0_19], %36 {strides = array<i32>} : memref<256x128xbf16, #tpu.memory_space<vmem>>, vector<256x128xbf16>,
      %c0_i32_20 = arith.constant 0 : i32
      %39 = arith.cmpi eq, %arg0, %c0_i32_20 : i32
      %40 = arith.extui %39 : i1 to i32
      %c0_i32_21 = arith.constant 0 : i32
      %41 = arith.cmpi ne, %40, %c0_i32_21 : i32
      scf.if %41 {
        %48 = arith.index_cast %1 : i32 to index
        %c0_26 = arith.constant 0 : index
        %49 = vector.load %arg2[%48, %c0_26] : memref<256x128xf32, #tpu.memory_space<vmem>>, vector<256x128xf32>
        %50 = arith.addf %49, %35 : vector<256x128xf32>
        %51 = arith.index_cast %1 : i32 to index
        %c0_27 = arith.constant 0 : index
        %52 = vector.load %arg7[%51, %c0_27] : memref<256x128xf32, #tpu.memory_space<vmem>>, vector<256x128xf32>
        tpu.vector_store %arg7[%51, %c0_27], %50 {strides = array<i32>} : memref<256x128xf32, #tpu.memory_space<vmem>>, vector<256x128xf32>,
      } else {
      }
      %c0_i32_22 = arith.constant 0 : i32
      %42 = arith.cmpi sgt, %arg0, %c0_i32_22 : i32
      %43 = arith.extui %42 : i1 to i32
      %c0_i32_23 = arith.constant 0 : i32
      %44 = arith.cmpi ne, %43, %c0_i32_23 : i32
      scf.if %44 {
        %48 = arith.index_cast %1 : i32 to index
        %c0_26 = arith.constant 0 : index
        %49 = vector.load %arg7[%48, %c0_26] : memref<256x128xf32, #tpu.memory_space<vmem>>, vector<256x128xf32>
        %50 = arith.addf %49, %35 : vector<256x128xf32>
        %51 = arith.index_cast %1 : i32 to index
        %c0_27 = arith.constant 0 : index
        %52 = vector.load %arg7[%51, %c0_27] : memref<256x128xf32, #tpu.memory_space<vmem>>, vector<256x128xf32>
        tpu.vector_store %arg7[%51, %c0_27], %50 {strides = array<i32>} : memref<256x128xf32, #tpu.memory_space<vmem>>, vector<256x128xf32>,
      } else {
      }
      %c1_i32_24 = arith.constant 1 : i32
      %45 = arith.cmpi eq, %arg0, %c1_i32_24 : i32
      %46 = arith.extui %45 : i1 to i32
      %c0_i32_25 = arith.constant 0 : i32
      %47 = arith.cmpi ne, %46, %c0_i32_25 : i32
      scf.if %47 {
        %48 = arith.index_cast %1 : i32 to index
        %c0_26 = arith.constant 0 : index
        %49 = vector.load %arg7[%48, %c0_26] : memref<256x128xf32, #tpu.memory_space<vmem>>, vector<256x128xf32>
        %cst_27 = arith.constant 0.333333343 : f32
        %50 = vector.broadcast %cst_27 : f32 to vector<256x128xf32>
        %51 = arith.mulf %49, %50 : vector<256x128xf32>
        %c0_28 = arith.constant 0 : index
        %c0_29 = arith.constant 0 : index
        %52 = vector.load %arg4[%c0_28, %c0_29] : memref<256x128xf32, #tpu.memory_space<vmem>>, vector<256x128xf32>
        tpu.vector_store %arg4[%c0_28, %c0_29], %51 {strides = array<i32>} : memref<256x128xf32, #tpu.memory_space<vmem>>, vector<256x128xf32>,
      } else {
      }
    } else {
    }
    %c2_i32_8 = arith.constant 2 : i32
    %c0_i32_9 = arith.constant 0 : i32
    %20 = arith.cmpi eq, %c2_i32_8, %c0_i32_9 : i32
    %c1_i32_10 = arith.constant 1 : i32
    %21 = arith.select %20, %c1_i32_10, %c2_i32_8 : i32
    %22 = arith.remsi %arg0, %21 : i32
    %c0_i32_11 = arith.constant 0 : i32
    %23 = arith.cmpi ne, %22, %c0_i32_11 : i32
    %c0_i32_12 = arith.constant 0 : i32
    %24 = arith.cmpi slt, %22, %c0_i32_12 : i32
    %c0_i32_13 = arith.constant 0 : i32
    %25 = arith.cmpi slt, %21, %c0_i32_13 : i32
    %26 = arith.xori %24, %25 : i1
    %27 = arith.andi %26, %23 : i1
    %28 = arith.addi %22, %21 : i32
    %29 = arith.select %27, %28, %22 : i32
    %c1_i32_14 = arith.constant 1 : i32
    %30 = arith.cmpi eq, %29, %c1_i32_14 : i32
    %31 = arith.extui %30 : i1 to i32
    %c0_i32_15 = arith.constant 0 : i32
    %32 = arith.cmpi ne, %31, %c0_i32_15 : i32
    scf.if %32 {
      %c0 = arith.constant 0 : index
      %c0_16 = arith.constant 0 : index
      %33 = vector.load %arg3[%c0, %c0_16] : memref<256x256xbf16, #tpu.memory_space<vmem>>, vector<256x256xbf16>
      %c0_17 = arith.constant 0 : index
      %c0_18 = arith.constant 0 : index
      %34 = vector.load %arg6[%c0_17, %c0_18] : memref<256x128xbf16, #tpu.memory_space<vmem>>, vector<256x128xbf16>
      %cst = arith.constant dense<0.000000e+00> : vector<256x128xf32>
      %35 = tpu.matmul %33, %34, %cst {dimension_numbers = #tpu.dot_dimension_numbers<[1], [0], [0], [1], [0, 0, 1, 1], [], []>} : vector<256x256xbf16>, vector<256x128xbf16>, vector<256x128xf32> -> vector<256x128xf32>
      %36 = arith.truncf %35 : vector<256x128xf32> to vector<256x128xbf16>
      %37 = arith.index_cast %1 : i32 to index
      %c0_19 = arith.constant 0 : index
      %38 = vector.load %arg5[%37, %c0_19] : memref<256x128xbf16, #tpu.memory_space<vmem>>, vector<256x128xbf16>
      tpu.vector_store %arg5[%37, %c0_19], %36 {strides = array<i32>} : memref<256x128xbf16, #tpu.memory_space<vmem>>, vector<256x128xbf16>,
      %c0_i32_20 = arith.constant 0 : i32
      %39 = arith.cmpi eq, %arg0, %c0_i32_20 : i32
      %40 = arith.extui %39 : i1 to i32
      %c0_i32_21 = arith.constant 0 : i32
      %41 = arith.cmpi ne, %40, %c0_i32_21 : i32
      scf.if %41 {
        %48 = arith.index_cast %1 : i32 to index
        %c0_26 = arith.constant 0 : index
        %49 = vector.load %arg2[%48, %c0_26] : memref<256x128xf32, #tpu.memory_space<vmem>>, vector<256x128xf32>
        %50 = arith.addf %49, %35 : vector<256x128xf32>
        %51 = arith.index_cast %1 : i32 to index
        %c0_27 = arith.constant 0 : index
        %52 = vector.load %arg7[%51, %c0_27] : memref<256x128xf32, #tpu.memory_space<vmem>>, vector<256x128xf32>
        tpu.vector_store %arg7[%51, %c0_27], %50 {strides = array<i32>} : memref<256x128xf32, #tpu.memory_space<vmem>>, vector<256x128xf32>,
      } else {
      }
      %c0_i32_22 = arith.constant 0 : i32
      %42 = arith.cmpi sgt, %arg0, %c0_i32_22 : i32
      %43 = arith.extui %42 : i1 to i32
      %c0_i32_23 = arith.constant 0 : i32
      %44 = arith.cmpi ne, %43, %c0_i32_23 : i32
      scf.if %44 {
        %48 = arith.index_cast %1 : i32 to index
        %c0_26 = arith.constant 0 : index
        %49 = vector.load %arg7[%48, %c0_26] : memref<256x128xf32, #tpu.memory_space<vmem>>, vector<256x128xf32>
        %50 = arith.addf %49, %35 : vector<256x128xf32>
        %51 = arith.index_cast %1 : i32 to index
        %c0_27 = arith.constant 0 : index
        %52 = vector.load %arg7[%51, %c0_27] : memref<256x128xf32, #tpu.memory_space<vmem>>, vector<256x128xf32>
        tpu.vector_store %arg7[%51, %c0_27], %50 {strides = array<i32>} : memref<256x128xf32, #tpu.memory_space<vmem>>, vector<256x128xf32>,
      } else {
      }
      %c1_i32_24 = arith.constant 1 : i32
      %45 = arith.cmpi eq, %arg0, %c1_i32_24 : i32
      %46 = arith.extui %45 : i1 to i32
      %c0_i32_25 = arith.constant 0 : i32
      %47 = arith.cmpi ne, %46, %c0_i32_25 : i32
      scf.if %47 {
        %48 = arith.index_cast %1 : i32 to index
        %c0_26 = arith.constant 0 : index
        %49 = vector.load %arg7[%48, %c0_26] : memref<256x128xf32, #tpu.memory_space<vmem>>, vector<256x128xf32>
        %cst_27 = arith.constant 0.333333343 : f32
        %50 = vector.broadcast %cst_27 : f32 to vector<256x128xf32>
        %51 = arith.mulf %49, %50 : vector<256x128xf32>
        %c0_28 = arith.constant 0 : index
        %c0_29 = arith.constant 0 : index
        %52 = vector.load %arg4[%c0_28, %c0_29] : memref<256x128xf32, #tpu.memory_space<vmem>>, vector<256x128xf32>
        tpu.vector_store %arg4[%c0_28, %c0_29], %51 {strides = array<i32>} : memref<256x128xf32, #tpu.memory_space<vmem>>, vector<256x128xf32>,
      } else {
      }
    } else {
    }
    return
  }
  func.func @transform_0(%arg0: i32, %arg1: i32) -> (i32, i32) {
    %c0_i32 = arith.constant 0 : i32
    %c0_i32_0 = arith.constant 0 : i32
    %c0_i32_1 = arith.constant 0 : i32
    return %c0_i32, %c0_i32_0 : i32, i32
  }
  func.func @transform_1(%arg0: i32, %arg1: i32) -> (i32, i32) {
    %c0_i32 = arith.constant 0 : i32
    %c0_i32_0 = arith.constant 0 : i32
    return %arg1, %c0_i32 : i32, i32
  }
  func.func @transform_2(%arg0: i32, %arg1: i32) -> (i32, i32) {
    %c0_i32 = arith.constant 0 : i32
    %c0_i32_0 = arith.constant 0 : i32
    return %arg1, %c0_i32 : i32, i32
  }
}

</mosaic_0001>

<llo_original>
// kernel: tpu_custom_call.1
$region0: #{tpu_custom_call.1}
  #allocation0 [shape = 'u32[]', space=smem, size = 0x4, offset = 0x4, fixed_abs, tag = 'smem constant byte address 0x4 - core index']
  #allocation1 [shape = 'u32[144,128]{1,0:T(1,128)}', space=vmem, size = 0x12000, scoped, tag = 'internal scratch']
  #allocation2 [shape = 'bf16[256,128]{1,0:T(16,128)(2,1)}', space=vmem, size = 0x10000, scoped, tag = 'scratch operand']
  #allocation3 [shape = 'bf16[256,128]{1,0:T(16,128)(2,1)}', space=vmem, size = 0x10000, scoped, tag = 'scratch operand']
  #allocation4 [shape = 'f32[256,128]{1,0:T(8,128)}', space=vmem, size = 0x20000, scoped, tag = 'scratch operand']
  %s0 = inlined_call_operand.hbm [shape: f32[256,128], index: 0, kind: input, shape index: {}]
  %s1 = inlined_call_operand.hbm [shape: bf16[256,256], index: 1, kind: input, shape index: {}]
  %s2 = inlined_call_operand.hbm [shape: f32[256,128], index: 2, kind: output, shape index: {}]
  %s3 = sld [smem:[#allocation0]]
  $region85: #{tpu_custom_call.1} parent=0
    _
  %s5 = ssub.s32 1, %s3
  %s6 = scalar_select 0, %s5, %s3
  $region1: #{tpu_custom_call.1} parent=0
    #allocation5 [shape = 'u8[131072]{0}', space=vmem, size = 0x20000, scoped, tag = 'input window, operand 0, single buffered']
    #allocation6 [shape = 's32[2]{0}', space=sflag, size = 0x8, scoped, tag = 'scoped memory for tpu_custom_call.1']
    #allocation7 [shape = 's32[2]{0}', space=sflag, size = 0x8, scoped, tag = 'scoped memory for tpu_custom_call.1']
    #allocation8 [shape = 'u8[131072]{0}', space=vmem, size = 0x20000, scoped, tag = 'input window, operand 1, single buffered']
    #allocation9 [shape = 's32[1]{0}', space=sflag, size = 0x4, scoped, tag = 'scoped memory for tpu_custom_call.1']
    #allocation10 [shape = 'u8[131072]{0}', space=vmem, size = 0x20000, scoped, tag = 'output window, operand 0, single buffered']
    %7 = vsyncpa [#allocation6], 0
    %8 = vsyncpa [#allocation9], 0
    %9 = vsyncpa [#allocation7], 0
    loop: start=0, step=1, limit=4
    $region2: #{tpu_custom_call.1} parent=1 // loop_pre_header
      _
    $region3: #{tpu_custom_call.1} parent=1 // loop_header
      %s11 = sphi 0, %s15
      %p12 = scmp.ge.s32.totalorder %s11, 4
      %s18 = sphi 0, %s30
      %s19 = sphi 0, %s26
      %s20 = sphi 0, %s18
      %s21 = sphi 0, %s19
      %s22 = sphi 0, %s20
      %s23 = sphi 0, %s21
      %s31 = sphi 0, %s31
      %s33 = sphi 0, %s31
      %s34 = sphi 0, %s33
      %s48 = sphi 0, %s34
      %s54 = sphi 0, %s56
      %s57 = sphi 0, %s54
      %s58 = sphi 0, %s57
      %s74 = sphi 0, %s58
      %s80 = sphi 0, %s82
      %s83 = sphi 0, %s80
      %s84 = sphi 0, %s83
      %s100 = sphi 0, %s84
    $region4: #{tpu_custom_call.1} parent=1 // loop_header_branch
      %14 = sbr.rel (%p12) target = $region8
    $region5: #{tpu_custom_call.1} parent=1 // loop_body
      %s16 = ssub.s32 %s11, 1
      %s17 = ssub.s32 %s11, 2
      %s24 = sadd.s32 1, %s19
      %p25 = scmp.ge.s32.totalorder %s24, 1
      %s26 = scalar_select %p25, 0, %s24
      %s27 = sadd.s32 1, %s18
      %s28 = scalar_select %p25, %s27, %s18
      %p29 = scmp.ge.s32.totalorder %s28, 2
      %s30 = scalar_select %p29, 0, %s28
      %s32 = sadd.s32 %s31, 1
      %p35 = scmp.eq.s32.totalorder %s11, 1
      %p36 = scmp.ne.s32.totalorder %s31, %s33
      %p37 = scmp.eq.s32.totalorder %s11, 0
      %p38 = por %p36, %p37
      %p39 = scmp.ne.s32.totalorder %s31, %s33
      %p40 = scmp.eq.s32.totalorder %s16, 1
      %p41 = por %p39, %p40
      %p42 = scmp.ne.s32.totalorder %s33, %s34
      %p43 = scmp.eq.s32.totalorder %s16, 0
      %p44 = por %p42, %p43
      %p45 = scmp.ne.s32.totalorder %s33, %s34
      %p46 = scmp.eq.s32.totalorder %s17, 1
      %p47 = por %p45, %p46
      %p49 = scmp.ne.s32.totalorder %s34, %s48
      %p50 = scmp.eq.s32.totalorder %s17, 0
      %p51 = por %p49, %p50
      %s52 = ssub.s32 %s19, %s26
      %p53 = scmp.eq.s32.totalorder %s52, 0
      %s55 = sadd.s32 %s54, 1
      %s56 = scalar_select %p53, %s54, %s55
      %p59 = pneg %p53
      %p60 = scmp.eq.s32.totalorder %s11, 1
      %p61 = por %p59, %p60
      %p62 = scmp.ne.s32.totalorder %s54, %s57
      %p63 = scmp.eq.s32.totalorder %s11, 0
      %p64 = por %p62, %p63
      %p65 = scmp.ne.s32.totalorder %s54, %s57
      %p66 = scmp.eq.s32.totalorder %s16, 1
      %p67 = por %p65, %p66
      %p68 = scmp.ne.s32.totalorder %s57, %s58
      %p69 = scmp.eq.s32.totalorder %s16, 0
      %p70 = por %p68, %p69
      %p71 = scmp.ne.s32.totalorder %s57, %s58
      %p72 = scmp.eq.s32.totalorder %s17, 1
      %p73 = por %p71, %p72
      %p75 = scmp.ne.s32.totalorder %s58, %s74
      %p76 = scmp.eq.s32.totalorder %s17, 0
      %p77 = por %p75, %p76
      %s78 = ssub.s32 %s19, %s26
      %p79 = scmp.eq.s32.totalorder %s78, 0
      %s81 = sadd.s32 %s80, 1
      %s82 = scalar_select %p79, %s80, %s81
      %p85 = pneg %p79
      %p86 = scmp.eq.s32.totalorder %s11, 1
      %p87 = por %p85, %p86
      %p88 = scmp.ne.s32.totalorder %s80, %s83
      %p89 = scmp.eq.s32.totalorder %s11, 0
      %p90 = por %p88, %p89
      %p91 = scmp.ne.s32.totalorder %s80, %s83
      %p92 = scmp.eq.s32.totalorder %s16, 1
      %p93 = por %p91, %p92
      %p94 = scmp.ne.s32.totalorder %s83, %s84
      %p95 = scmp.eq.s32.totalorder %s16, 0
      %p96 = por %p94, %p95
      %p97 = scmp.ne.s32.totalorder %s83, %s84
      %p98 = scmp.eq.s32.totalorder %s17, 1
      %p99 = por %p97, %p98
      %p101 = scmp.ne.s32.totalorder %s84, %s100
      %p102 = scmp.eq.s32.totalorder %s17, 0
      %p103 = por %p101, %p102
      %p104 = scmp.le.s32.totalorder 1, %s11
      %p105 = scmp.lt.s32.totalorder %s11, 3
      %p106 = pnand %p104, %p105
      %p107 = pneg %p106
      // Predicated region
      $region9: #{tpu_custom_call.1} parent=5 // pred_check
        _
      $region10: #{tpu_custom_call.1} parent=5 // pred_check_branch
        %109 = sbr.rel (%p106) target = $region12
      $region11: #{tpu_custom_call.1} parent=5 // pred_region
        %s110 = ssub.s32 %s11, 1
        // Predicated region
        $region13: #{tpu_custom_call.1} parent=11 // pred_check
          %p111 = pneg %p44
        $region14: #{tpu_custom_call.1} parent=11 // pred_check_branch
          %113 = sbr.rel (%p111) target = $region16
        $region15: #{tpu_custom_call.1} parent=11 // pred_region
          %s115 = ssub.s32 4096, 4096
          %116 = vsyncadd [#allocation6], %s115
          %s117 = sshll.u32 [#allocation5], 4
          %s118 = int_to_ptr.vmem [resolvable:$true] %s117
          %123 = dma.hbm_to_vmem [thread:$0]  %s0, 4096, %s118, [#allocation6], 128, 128, 8
        $region16: #{tpu_custom_call.1} parent=11 // pred_fallthru
          _
        // Predicated region
        $region17: #{tpu_custom_call.1} parent=11 // pred_check
          %p124 = pneg %p70
        $region18: #{tpu_custom_call.1} parent=11 // pred_check_branch
          %126 = sbr.rel (%p124) target = $region20
        $region19: #{tpu_custom_call.1} parent=11 // pred_region
          %s127 = smul.u32 32, %s21
          %s129 = ssub.s32 4096, 4096
          %130 = vsyncadd [#allocation9], %s129
          %s131 = smul.addr %s127, 2
          %s132 = smul.addr %s131, 64
          %s133 = scalar_lea.hbm %s1, %s132
          %s134 = sshll.u32 [#allocation8], 4
          %s135 = int_to_ptr.vmem [resolvable:$true] %s134
          %140 = dma.hbm_to_vmem [thread:$0]  %s133, 4096, %s135, [#allocation9], 128, 128, 8
        $region20: #{tpu_custom_call.1} parent=11 // pred_fallthru
          _
      $region12: #{tpu_custom_call.1} parent=5 // pred_fallthru
        _
      %p141 = scmp.lt.s32.totalorder %s11, 2
      // Predicated region
      $region21: #{tpu_custom_call.1} parent=5 // pred_check
        %p142 = pneg %p141
      $region22: #{tpu_custom_call.1} parent=5 // pred_check_branch
        %144 = sbr.rel (%p142) target = $region24
      $region23: #{tpu_custom_call.1} parent=5 // pred_region
        _
      $region24: #{tpu_custom_call.1} parent=5 // pred_fallthru
        _
      %p145 = scmp.le.s32.totalorder 1, %s11
      %p146 = scmp.lt.s32.totalorder %s11, 3
      %p147 = pnand %p145, %p146
      %p148 = pneg %p147
      // Predicated region
      $region25: #{tpu_custom_call.1} parent=5 // pred_check
        _
      $region26: #{tpu_custom_call.1} parent=5 // pred_check_branch
        %150 = sbr.rel (%p147) target = $region28
      $region27: #{tpu_custom_call.1} parent=5 // pred_region
        %s151 = ssub.s32 %s11, 1
        // Predicated region
        $region29: #{tpu_custom_call.1} parent=27 // pred_check
          %p152 = pneg %p44
        $region30: #{tpu_custom_call.1} parent=27 // pred_check_branch
          %154 = sbr.rel (%p152) target = $region32
        $region31: #{tpu_custom_call.1} parent=27 // pred_region
          %155 = dma.done [#allocation6], 4096
        $region32: #{tpu_custom_call.1} parent=27 // pred_fallthru
          _
        // Predicated region
        $region33: #{tpu_custom_call.1} parent=27 // pred_check
          %p156 = pneg %p70
        $region34: #{tpu_custom_call.1} parent=27 // pred_check_branch
          %158 = sbr.rel (%p156) target = $region36
        $region35: #{tpu_custom_call.1} parent=27 // pred_region
          %159 = dma.done [#allocation9], 4096
        $region36: #{tpu_custom_call.1} parent=27 // pred_fallthru
          _
        %p160 = pneg %p44
        %p161 = pneg %p41
        %p162 = pneg %p70
        %p163 = pneg %p67
        %p164 = pneg %p96
        %p165 = pneg %p93
        %s166 = smul.u32 32, %s21
        %s167 = smul.u32 32, %s21
        %s169 = smul.u32 %s21, 256
        %p170 = scmp.eq.s32.totalorder %s20, 0
        %p171 = scmp.eq.s32.totalorder %s21, 0
        %p172 = pnand %p170, %p171
        %p173 = pneg %p172
        // Predicated region
        $region37: #{tpu_custom_call.1} parent=27 // pred_check
          _
        $region38: #{tpu_custom_call.1} parent=27 // pred_check_branch
          %175 = sbr.rel (%p172) target = $region40
        $region39: #{tpu_custom_call.1} parent=27 // pred_region
          %v176 = vld [vmem:[#allocation5] sm:$0xff]
          %v177 = vld [vmem:[#allocation5 + $0x8] sm:$0xff]
          %v178 = vld [vmem:[#allocation5 + $0x10] sm:$0xff]
          %v179 = vld [vmem:[#allocation5 + $0x18] sm:$0xff]
          %v180 = vld [vmem:[#allocation5 + $0x20] sm:$0xff]
          %v181 = vld [vmem:[#allocation5 + $0x28] sm:$0xff]
          %v182 = vld [vmem:[#allocation5 + $0x30] sm:$0xff]
          %v183 = vld [vmem:[#allocation5 + $0x38] sm:$0xff]
          %v184 = vld [vmem:[#allocation5 + $0x40] sm:$0xff]
          %v185 = vld [vmem:[#allocation5 + $0x48] sm:$0xff]
          %v186 = vld [vmem:[#allocation5 + $0x50] sm:$0xff]
          %v187 = vld [vmem:[#allocation5 + $0x58] sm:$0xff]
          %v188 = vld [vmem:[#allocation5 + $0x60] sm:$0xff]
          %v189 = vld [vmem:[#allocation5 + $0x68] sm:$0xff]
          %v190 = vld [vmem:[#allocation5 + $0x70] sm:$0xff]
          %v191 = vld [vmem:[#allocation5 + $0x78] sm:$0xff]
          %v192 = vld [vmem:[#allocation5 + $0x80] sm:$0xff]
          %v193 = vld [vmem:[#allocation5 + $0x88] sm:$0xff]
          %v194 = vld [vmem:[#allocation5 + $0x90] sm:$0xff]
          %v195 = vld [vmem:[#allocation5 + $0x98] sm:$0xff]
          %v196 = vld [vmem:[#allocation5 + $0xa0] sm:$0xff]
          %v197 = vld [vmem:[#allocation5 + $0xa8] sm:$0xff]
          %v198 = vld [vmem:[#allocation5 + $0xb0] sm:$0xff]
          %v199 = vld [vmem:[#allocation5 + $0xb8] sm:$0xff]
          %v200 = vld [vmem:[#allocation5 + $0xc0] sm:$0xff]
          %v201 = vld [vmem:[#allocation5 + $0xc8] sm:$0xff]
          %v202 = vld [vmem:[#allocation5 + $0xd0] sm:$0xff]
          %v203 = vld [vmem:[#allocation5 + $0xd8] sm:$0xff]
          %v204 = vld [vmem:[#allocation5 + $0xe0] sm:$0xff]
          %v205 = vld [vmem:[#allocation5 + $0xe8] sm:$0xff]
          %v206 = vld [vmem:[#allocation5 + $0xf0] sm:$0xff]
          %v207 = vld [vmem:[#allocation5 + $0xf8] sm:$0xff]
          %v208 = vpack.c.bf16 %v177, %v176
          %v209 = vpack.c.bf16 %v179, %v178
          %v210 = vpack.c.bf16 %v181, %v180
          %v211 = vpack.c.bf16 %v183, %v182
          %v212 = vpack.c.bf16 %v185, %v184
          %v213 = vpack.c.bf16 %v187, %v186
          %v214 = vpack.c.bf16 %v189, %v188
          %v215 = vpack.c.bf16 %v191, %v190
          %v216 = vpack.c.bf16 %v193, %v192
          %v217 = vpack.c.bf16 %v195, %v194
          %v218 = vpack.c.bf16 %v197, %v196
          %v219 = vpack.c.bf16 %v199, %v198
          %v220 = vpack.c.bf16 %v201, %v200
          %v221 = vpack.c.bf16 %v203, %v202
          %v222 = vpack.c.bf16 %v205, %v204
          %v223 = vpack.c.bf16 %v207, %v206
          %224 = vst [vmem:[#allocation2] sm:$0xff] %v208
          %225 = vst [vmem:[#allocation2 + $0x8] sm:$0xff] %v209
          %226 = vst [vmem:[#allocation2 + $0x10] sm:$0xff] %v210
          %227 = vst [vmem:[#allocation2 + $0x18] sm:$0xff] %v211
          %228 = vst [vmem:[#allocation2 + $0x20] sm:$0xff] %v212
          %229 = vst [vmem:[#allocation2 + $0x28] sm:$0xff] %v213
          %230 = vst [vmem:[#allocation2 + $0x30] sm:$0xff] %v214
          %231 = vst [vmem:[#allocation2 + $0x38] sm:$0xff] %v215
          %232 = vst [vmem:[#allocation2 + $0x40] sm:$0xff] %v216
          %233 = vst [vmem:[#allocation2 + $0x48] sm:$0xff] %v217
          %234 = vst [vmem:[#allocation2 + $0x50] sm:$0xff] %v218
          %235 = vst [vmem:[#allocation2 + $0x58] sm:$0xff] %v219
          %236 = vst [vmem:[#allocation2 + $0x60] sm:$0xff] %v220
          %237 = vst [vmem:[#allocation2 + $0x68] sm:$0xff] %v221
          %238 = vst [vmem:[#allocation2 + $0x70] sm:$0xff] %v222
          %239 = vst [vmem:[#allocation2 + $0x78] sm:$0xff] %v223
        $region40: #{tpu_custom_call.1} parent=27 // pred_fallthru
          _
        %p240 = scmp.lt.s32.totalorder %s20, 0
        %s241 = ssub.s32 0, %s20
        %s242 = scalar_select %p240, %s241, %s20
        %s243 = sand.u32 %s242, 1
        %s244 = ssub.s32 0, %s243
        %s245 = scalar_select %p240, %s244, %s243
        %p246 = scmp.ne.s32.totalorder %s245, 0
        %p247 = scmp.lt.s32.totalorder %s245, 0
        %p248 = pnand %p247, %p246
        %p249 = pneg %p248
        %s250 = sadd.s32 %s245, 2
        %s251 = scalar_select %p249, %s250, %s245
        %p252 = scmp.eq.s32.totalorder %s251, 0
        // Predicated region
        $region41: #{tpu_custom_call.1} parent=27 // pred_check
          %p253 = pneg %p252
        $region42: #{tpu_custom_call.1} parent=27 // pred_check_branch
          %255 = sbr.rel (%p253) target = $region44
        $region43: #{tpu_custom_call.1} parent=27 // pred_region
          %v256 = vld [vmem:[#allocation8] sm:$0xff]
          %v257 = vld [vmem:[#allocation8 + $0x8] sm:$0xff]
          %v258 = vld [vmem:[#allocation8 + $0x10] sm:$0xff]
          %v259 = vld [vmem:[#allocation8 + $0x18] sm:$0xff]
          %v260 = vld [vmem:[#allocation8 + $0x20] sm:$0xff]
          %v261 = vld [vmem:[#allocation8 + $0x28] sm:$0xff]
          %v262 = vld [vmem:[#allocation8 + $0x30] sm:$0xff]
          %v263 = vld [vmem:[#allocation8 + $0x38] sm:$0xff]
          %v264 = vld [vmem:[#allocation8 + $0x40] sm:$0xff]
          %v265 = vld [vmem:[#allocation8 + $0x48] sm:$0xff]
          %v266 = vld [vmem:[#allocation8 + $0x50] sm:$0xff]
          %v267 = vld [vmem:[#allocation8 + $0x58] sm:$0xff]
          %v268 = vld [vmem:[#allocation8 + $0x60] sm:$0xff]
          %v269 = vld [vmem:[#allocation8 + $0x68] sm:$0xff]
          %v270 = vld [vmem:[#allocation8 + $0x70] sm:$0xff]
          %v271 = vld [vmem:[#allocation8 + $0x78] sm:$0xff]
          %v272 = vld [vmem:[#allocation8 + $0x80] sm:$0xff]
          %v273 = vld [vmem:[#allocation8 + $0x88] sm:$0xff]
          %v274 = vld [vmem:[#allocation8 + $0x90] sm:$0xff]
          %v275 = vld [vmem:[#allocation8 + $0x98] sm:$0xff]
          %v276 = vld [vmem:[#allocation8 + $0xa0] sm:$0xff]
          %v277 = vld [vmem:[#allocation8 + $0xa8] sm:$0xff]
          %v278 = vld [vmem:[#allocation8 + $0xb0] sm:$0xff]
          %v279 = vld [vmem:[#allocation8 + $0xb8] sm:$0xff]
          %v280 = vld [vmem:[#allocation8 + $0xc0] sm:$0xff]
          %v281 = vld [vmem:[#allocation8 + $0xc8] sm:$0xff]
          %v282 = vld [vmem:[#allocation8 + $0xd0] sm:$0xff]
          %v283 = vld [vmem:[#allocation8 + $0xd8] sm:$0xff]
          %v284 = vld [vmem:[#allocation8 + $0xe0] sm:$0xff]
          %v285 = vld [vmem:[#allocation8 + $0xe8] sm:$0xff]
          %v286 = vld [vmem:[#allocation8 + $0xf0] sm:$0xff]
          %v287 = vld [vmem:[#allocation8 + $0xf8] sm:$0xff]
          %v288 = vld [vmem:[#allocation2] sm:$0xff]
          %v289 = vld [vmem:[#allocation2 + $0x8] sm:$0xff]
          %v290 = vld [vmem:[#allocation2 + $0x10] sm:$0xff]
          %v291 = vld [vmem:[#allocation2 + $0x18] sm:$0xff]
          %v292 = vld [vmem:[#allocation2 + $0x20] sm:$0xff]
          %v293 = vld [vmem:[#allocation2 + $0x28] sm:$0xff]
          %v294 = vld [vmem:[#allocation2 + $0x30] sm:$0xff]
          %v295 = vld [vmem:[#allocation2 + $0x38] sm:$0xff]
          %v296 = vld [vmem:[#allocation2 + $0x40] sm:$0xff]
          %v297 = vld [vmem:[#allocation2 + $0x48] sm:$0xff]
          %v298 = vld [vmem:[#allocation2 + $0x50] sm:$0xff]
          %v299 = vld [vmem:[#allocation2 + $0x58] sm:$0xff]
          %v300 = vld [vmem:[#allocation2 + $0x60] sm:$0xff]
          %v301 = vld [vmem:[#allocation2 + $0x68] sm:$0xff]
          %v302 = vld [vmem:[#allocation2 + $0x70] sm:$0xff]
          %v303 = vld [vmem:[#allocation2 + $0x78] sm:$0xff]
          %v336 = vunpack.c.l.b16 %v256
          %v337 = vunpack.c.h.b16 %v256
          %v338 = vunpack.c.l.b16 %v257
          %v339 = vunpack.c.h.b16 %v257
          %v340 = vunpack.c.l.b16 %v258
          %v341 = vunpack.c.h.b16 %v258
          %v342 = vunpack.c.l.b16 %v259
          %v343 = vunpack.c.h.b16 %v259
          %v344 = vunpack.c.l.b16 %v260
          %v345 = vunpack.c.h.b16 %v260
          %v346 = vunpack.c.l.b16 %v261
          %v347 = vunpack.c.h.b16 %v261
          %v348 = vunpack.c.l.b16 %v262
          %v349 = vunpack.c.h.b16 %v262
          %v350 = vunpack.c.l.b16 %v263
          %v351 = vunpack.c.h.b16 %v263
          %v352 = vunpack.c.l.b16 %v264
          %v353 = vunpack.c.h.b16 %v264
          %v354 = vunpack.c.l.b16 %v265
          %v355 = vunpack.c.h.b16 %v265
          %v356 = vunpack.c.l.b16 %v266
          %v357 = vunpack.c.h.b16 %v266
          %v358 = vunpack.c.l.b16 %v267
          %v359 = vunpack.c.h.b16 %v267
          %v360 = vunpack.c.l.b16 %v268
          %v361 = vunpack.c.h.b16 %v268
          %v362 = vunpack.c.l.b16 %v269
          %v363 = vunpack.c.h.b16 %v269
          %v364 = vunpack.c.l.b16 %v270
          %v365 = vunpack.c.h.b16 %v270
          %v366 = vunpack.c.l.b16 %v271
          %v367 = vunpack.c.h.b16 %v271
          %v368 = vunpack.c.l.b16 %v272
          %v369 = vunpack.c.h.b16 %v272
          %v370 = vunpack.c.l.b16 %v273
          %v371 = vunpack.c.h.b16 %v273
          %v372 = vunpack.c.l.b16 %v274
          %v373 = vunpack.c.h.b16 %v274
          %v374 = vunpack.c.l.b16 %v275
          %v375 = vunpack.c.h.b16 %v275
          %v376 = vunpack.c.l.b16 %v276
          %v377 = vunpack.c.h.b16 %v276
          %v378 = vunpack.c.l.b16 %v277
          %v379 = vunpack.c.h.b16 %v277
          %v380 = vunpack.c.l.b16 %v278
          %v381 = vunpack.c.h.b16 %v278
          %v382 = vunpack.c.l.b16 %v279
          %v383 = vunpack.c.h.b16 %v279
          %v384 = vunpack.c.l.b16 %v280
          %v385 = vunpack.c.h.b16 %v280
          %v386 = vunpack.c.l.b16 %v281
          %v387 = vunpack.c.h.b16 %v281
          %v388 = vunpack.c.l.b16 %v282
          %v389 = vunpack.c.h.b16 %v282
          %v390 = vunpack.c.l.b16 %v283
          %v391 = vunpack.c.h.b16 %v283
          %v392 = vunpack.c.l.b16 %v284
          %v393 = vunpack.c.h.b16 %v284
          %v394 = vunpack.c.l.b16 %v285
          %v395 = vunpack.c.h.b16 %v285
          %v396 = vunpack.c.l.b16 %v286
          %v397 = vunpack.c.h.b16 %v286
          %v398 = vunpack.c.l.b16 %v287
          %v399 = vunpack.c.h.b16 %v287
          %v400 = vpack.c.b16 %v338, %v336
          %v401 = vpack.c.b16 %v339, %v337
          %v402 = vpack.c.b16 %v342, %v340
          %v403 = vpack.c.b16 %v343, %v341
          %v404 = vpack.c.b16 %v346, %v344
          %v405 = vpack.c.b16 %v347, %v345
          %v406 = vpack.c.b16 %v350, %v348
          %v407 = vpack.c.b16 %v351, %v349
          %v408 = vpack.c.b16 %v354, %v352
          %v409 = vpack.c.b16 %v355, %v353
          %v410 = vpack.c.b16 %v358, %v356
          %v411 = vpack.c.b16 %v359, %v357
          %v412 = vpack.c.b16 %v362, %v360
          %v413 = vpack.c.b16 %v363, %v361
          %v414 = vpack.c.b16 %v366, %v364
          %v415 = vpack.c.b16 %v367, %v365
          %v416 = vpack.c.b16 %v370, %v368
          %v417 = vpack.c.b16 %v371, %v369
          %v418 = vpack.c.b16 %v374, %v372
          %v419 = vpack.c.b16 %v375, %v373
          %v420 = vpack.c.b16 %v378, %v376
          %v421 = vpack.c.b16 %v379, %v377
          %v422 = vpack.c.b16 %v382, %v380
          %v423 = vpack.c.b16 %v383, %v381
          %v424 = vpack.c.b16 %v386, %v384
          %v425 = vpack.c.b16 %v387, %v385
          %v426 = vpack.c.b16 %v390, %v388
          %v427 = vpack.c.b16 %v391, %v389
          %v428 = vpack.c.b16 %v394, %v392
          %v429 = vpack.c.b16 %v395, %v393
          %v430 = vpack.c.b16 %v398, %v396
          %v431 = vpack.c.b16 %v399, %v397
          %464 = vmatprep.subr.bf16.mxu0 0
          %465 = vmatpush1.bf16.msra.mxu0 %v288
          %466 = vmatprep.subr.bf16.mxu0 0
          %467 = vmatpush1.bf16.msra.mxu0 %v289
          %468 = vmatprep.subr.bf16.mxu0 0
          %469 = vmatpush1.bf16.msra.mxu0 %v290
          %470 = vmatprep.subr.bf16.mxu0 0
          %471 = vmatpush1.bf16.msra.mxu0 %v291
          %472 = vmatprep.subr.bf16.mxu0 0
          %473 = vmatpush1.bf16.msra.mxu0 %v292
          %474 = vmatprep.subr.bf16.mxu0 0
          %475 = vmatpush1.bf16.msra.mxu0 %v293
          %476 = vmatprep.subr.bf16.mxu0 0
          %477 = vmatpush1.bf16.msra.mxu0 %v294
          %478 = vmatprep.subr.bf16.mxu0 0
          %479 = vmatpush1.bf16.msra.mxu0 %v295
          %480 = vmatprep.subr.bf16.mxu0 0
          %481 = vmatpush1.bf16.msra.mxu0 %v296
          %482 = vmatprep.subr.bf16.mxu0 0
          %483 = vmatpush1.bf16.msra.mxu0 %v297
          %484 = vmatprep.subr.bf16.mxu0 0
          %485 = vmatpush1.bf16.msra.mxu0 %v298
          %486 = vmatprep.subr.bf16.mxu0 0
          %487 = vmatpush1.bf16.msra.mxu0 %v299
          %488 = vmatprep.subr.bf16.mxu0 0
          %489 = vmatpush1.bf16.msra.mxu0 %v300
          %490 = vmatprep.subr.bf16.mxu0 0
          %491 = vmatpush1.bf16.msra.mxu0 %v301
          %492 = vmatprep.subr.bf16.mxu0 0
          %493 = vmatpush1.bf16.msra.mxu0 %v302
          %494 = vmatprep.subr.bf16.mxu0 0
          %495 = vmatpush1.bf16.msra.mxu0 %v303
          %496 = vmatprep.mubr.bf16.mxu0 %v401
          %497 = vmatmul.mubr.bf16.gmra.mrb[0].mxu0 %v400
          %v498 = vpop.f32.mrb[0].mxu0
          %v499 = vadd.f32 0.0, %v498
          %v500 = vpop.f32.mrb[0].mxu0
          %v501 = vpop.f32.mrb[0].mxu0
          %v502 = vadd.f32 0.0, %v501
          %v503 = vpop.f32.mrb[0].mxu0
          %504 = vmatprep.mubr.bf16.mxu0 %v403
          %505 = vmatmul.mubr.bf16.gmra.mrb[0].mxu0 %v402
          %v506 = vpop.f32.mrb[0].mxu0
          %v507 = vadd.f32 0.0, %v506
          %v508 = vpop.f32.mrb[0].mxu0
          %v509 = vpop.f32.mrb[0].mxu0
          %v510 = vadd.f32 0.0, %v509
          %v511 = vpop.f32.mrb[0].mxu0
          %512 = vmatprep.mubr.bf16.mxu0 %v405
          %513 = vmatmul.mubr.bf16.gmra.mrb[0].mxu0 %v404
          %v514 = vpop.f32.mrb[0].mxu0
          %v515 = vadd.f32 0.0, %v514
          %v516 = vpop.f32.mrb[0].mxu0
          %v517 = vpop.f32.mrb[0].mxu0
          %v518 = vadd.f32 0.0, %v517
          %v519 = vpop.f32.mrb[0].mxu0
          %520 = vmatprep.mubr.bf16.mxu0 %v407
          %521 = vmatmul.mubr.bf16.gmra.mrb[0].mxu0 %v406
          %v522 = vpop.f32.mrb[0].mxu0
          %v523 = vadd.f32 0.0, %v522
          %v524 = vpop.f32.mrb[0].mxu0
          %v525 = vpop.f32.mrb[0].mxu0
          %v526 = vadd.f32 0.0, %v525
          %v527 = vpop.f32.mrb[0].mxu0
          %528 = vmatprep.mubr.bf16.mxu0 %v409
          %529 = vmatmul.mubr.bf16.gmra.mrb[0].mxu0 %v408
          %v530 = vpop.f32.mrb[0].mxu0
          %v531 = vadd.f32 0.0, %v530
          %v532 = vpop.f32.mrb[0].mxu0
          %v533 = vpop.f32.mrb[0].mxu0
          %v534 = vadd.f32 0.0, %v533
          %v535 = vpop.f32.mrb[0].mxu0
          %536 = vmatprep.mubr.bf16.mxu0 %v411
          %537 = vmatmul.mubr.bf16.gmra.mrb[0].mxu0 %v410
          %v538 = vpop.f32.mrb[0].mxu0
          %v539 = vadd.f32 0.0, %v538
          %v540 = vpop.f32.mrb[0].mxu0
          %v541 = vpop.f32.mrb[0].mxu0
          %v542 = vadd.f32 0.0, %v541
          %v543 = vpop.f32.mrb[0].mxu0
          %544 = vmatprep.mubr.bf16.mxu0 %v413
          %545 = vmatmul.mubr.bf16.gmra.mrb[0].mxu0 %v412
          %v546 = vpop.f32.mrb[0].mxu0
          %v547 = vadd.f32 0.0, %v546
          %v548 = vpop.f32.mrb[0].mxu0
          %v549 = vpop.f32.mrb[0].mxu0
          %v550 = vadd.f32 0.0, %v549
          %v551 = vpop.f32.mrb[0].mxu0
          %552 = vmatprep.mubr.bf16.mxu0 %v415
          %553 = vmatmul.mubr.bf16.gmra.mrb[0].mxu0 %v414
          %v554 = vpop.f32.mrb[0].mxu0
          %v555 = vadd.f32 0.0, %v554
          %v556 = vpop.f32.mrb[0].mxu0
          %v557 = vpop.f32.mrb[0].mxu0
          %v558 = vadd.f32 0.0, %v557
          %v559 = vpop.f32.mrb[0].mxu0
          %560 = vmatprep.mubr.bf16.mxu0 %v417
          %561 = vmatmul.mubr.bf16.gmra.mrb[0].mxu0 %v416
          %v562 = vpop.f32.mrb[0].mxu0
          %v563 = vadd.f32 0.0, %v562
          %v564 = vpop.f32.mrb[0].mxu0
          %v565 = vpop.f32.mrb[0].mxu0
          %v566 = vadd.f32 0.0, %v565
          %v567 = vpop.f32.mrb[0].mxu0
          %568 = vmatprep.mubr.bf16.mxu0 %v419
          %569 = vmatmul.mubr.bf16.gmra.mrb[0].mxu0 %v418
          %v570 = vpop.f32.mrb[0].mxu0
          %v571 = vadd.f32 0.0, %v570
          %v572 = vpop.f32.mrb[0].mxu0
          %v573 = vpop.f32.mrb[0].mxu0
          %v574 = vadd.f32 0.0, %v573
          %v575 = vpop.f32.mrb[0].mxu0
          %576 = vmatprep.mubr.bf16.mxu0 %v421
          %577 = vmatmul.mubr.bf16.gmra.mrb[0].mxu0 %v420
          %v578 = vpop.f32.mrb[0].mxu0
          %v579 = vadd.f32 0.0, %v578
          %v580 = vpop.f32.mrb[0].mxu0
          %v581 = vpop.f32.mrb[0].mxu0
          %v582 = vadd.f32 0.0, %v581
          %v583 = vpop.f32.mrb[0].mxu0
          %584 = vmatprep.mubr.bf16.mxu0 %v423
          %585 = vmatmul.mubr.bf16.gmra.mrb[0].mxu0 %v422
          %v586 = vpop.f32.mrb[0].mxu0
          %v587 = vadd.f32 0.0, %v586
          %v588 = vpop.f32.mrb[0].mxu0
          %v589 = vpop.f32.mrb[0].mxu0
          %v590 = vadd.f32 0.0, %v589
          %v591 = vpop.f32.mrb[0].mxu0
          %592 = vmatprep.mubr.bf16.mxu0 %v425
          %593 = vmatmul.mubr.bf16.gmra.mrb[0].mxu0 %v424
          %v594 = vpop.f32.mrb[0].mxu0
          %v595 = vadd.f32 0.0, %v594
          %v596 = vpop.f32.mrb[0].mxu0
          %v597 = vpop.f32.mrb[0].mxu0
          %v598 = vadd.f32 0.0, %v597
          %v599 = vpop.f32.mrb[0].mxu0
          %600 = vmatprep.mubr.bf16.mxu0 %v427
          %601 = vmatmul.mubr.bf16.gmra.mrb[0].mxu0 %v426
          %v602 = vpop.f32.mrb[0].mxu0
          %v603 = vadd.f32 0.0, %v602
          %v604 = vpop.f32.mrb[0].mxu0
          %v605 = vpop.f32.mrb[0].mxu0
          %v606 = vadd.f32 0.0, %v605
          %v607 = vpop.f32.mrb[0].mxu0
          %608 = vmatprep.mubr.bf16.mxu0 %v429
          %609 = vmatmul.mubr.bf16.gmra.mrb[0].mxu0 %v428
          %v610 = vpop.f32.mrb[0].mxu0
          %v611 = vadd.f32 0.0, %v610
          %v612 = vpop.f32.mrb[0].mxu0
          %v613 = vpop.f32.mrb[0].mxu0
          %v614 = vadd.f32 0.0, %v613
          %v615 = vpop.f32.mrb[0].mxu0
          %616 = vmatprep.mubr.bf16.mxu0 %v431
          %617 = vmatmul.mubr.bf16.gmra.mrb[0].mxu0 %v430
          %v618 = vpop.f32.mrb[0].mxu0
          %v619 = vadd.f32 0.0, %v618
          %v620 = vpop.f32.mrb[0].mxu0
          %v621 = vpop.f32.mrb[0].mxu0
          %v622 = vadd.f32 0.0, %v621
          %v623 = vpop.f32.mrb[0].mxu0
          %624 = vdwg.mxu0
          %v625 = vpack.c.bf16 %v502, %v499
          %v626 = vpack.c.bf16 %v510, %v507
          %v627 = vpack.c.bf16 %v518, %v515
          %v628 = vpack.c.bf16 %v526, %v523
          %v629 = vpack.c.bf16 %v534, %v531
          %v630 = vpack.c.bf16 %v542, %v539
          %v631 = vpack.c.bf16 %v550, %v547
          %v632 = vpack.c.bf16 %v558, %v555
          %v633 = vpack.c.bf16 %v566, %v563
          %v634 = vpack.c.bf16 %v574, %v571
          %v635 = vpack.c.bf16 %v582, %v579
          %v636 = vpack.c.bf16 %v590, %v587
          %v637 = vpack.c.bf16 %v598, %v595
          %v638 = vpack.c.bf16 %v606, %v603
          %v639 = vpack.c.bf16 %v614, %v611
          %v640 = vpack.c.bf16 %v622, %v619
          %s641 = sshra.s32 %s169, 4
          %s642 = sand.u32 %s169, 15
          %s643 = smul.addr %s641, 8
          %s644 = scalar_lea.vmem [#allocation3], %s643
          %645 = vst [vmem:[%s644] sm:$0xff] %v625
          %646 = vst [vmem:[%s644 + $0x8] sm:$0xff] %v626
          %647 = vst [vmem:[%s644 + $0x10] sm:$0xff] %v627
          %648 = vst [vmem:[%s644 + $0x18] sm:$0xff] %v628
          %649 = vst [vmem:[%s644 + $0x20] sm:$0xff] %v629
          %650 = vst [vmem:[%s644 + $0x28] sm:$0xff] %v630
          %651 = vst [vmem:[%s644 + $0x30] sm:$0xff] %v631
          %652 = vst [vmem:[%s644 + $0x38] sm:$0xff] %v632
          %653 = vst [vmem:[%s644 + $0x40] sm:$0xff] %v633
          %654 = vst [vmem:[%s644 + $0x48] sm:$0xff] %v634
          %655 = vst [vmem:[%s644 + $0x50] sm:$0xff] %v635
          %656 = vst [vmem:[%s644 + $0x58] sm:$0xff] %v636
          %657 = vst [vmem:[%s644 + $0x60] sm:$0xff] %v637
          %658 = vst [vmem:[%s644 + $0x68] sm:$0xff] %v638
          %659 = vst [vmem:[%s644 + $0x70] sm:$0xff] %v639
          %660 = vst [vmem:[%s644 + $0x78] sm:$0xff] %v640
          // Predicated region
          $region45: #{tpu_custom_call.1} parent=43 // pred_check
            %p661 = pneg %p170
          $region46: #{tpu_custom_call.1} parent=43 // pred_check_branch
            %663 = sbr.rel (%p661) target = $region48
          $region47: #{tpu_custom_call.1} parent=43 // pred_region
            %s664 = scalar_lea.vmem [#allocation5], %s169
            %v665 = vld [vmem:[%s664] sm:$0xff]
            %v666 = vld [vmem:[%s664 + $0x8] sm:$0xff]
            %v667 = vld [vmem:[%s664 + $0x10] sm:$0xff]
            %v668 = vld [vmem:[%s664 + $0x18] sm:$0xff]
            %v669 = vld [vmem:[%s664 + $0x20] sm:$0xff]
            %v670 = vld [vmem:[%s664 + $0x28] sm:$0xff]
            %v671 = vld [vmem:[%s664 + $0x30] sm:$0xff]
            %v672 = vld [vmem:[%s664 + $0x38] sm:$0xff]
            %v673 = vld [vmem:[%s664 + $0x40] sm:$0xff]
            %v674 = vld [vmem:[%s664 + $0x48] sm:$0xff]
            %v675 = vld [vmem:[%s664 + $0x50] sm:$0xff]
            %v676 = vld [vmem:[%s664 + $0x58] sm:$0xff]
            %v677 = vld [vmem:[%s664 + $0x60] sm:$0xff]
            %v678 = vld [vmem:[%s664 + $0x68] sm:$0xff]
            %v679 = vld [vmem:[%s664 + $0x70] sm:$0xff]
            %v680 = vld [vmem:[%s664 + $0x78] sm:$0xff]
            %v681 = vld [vmem:[%s664 + $0x80] sm:$0xff]
            %v682 = vld [vmem:[%s664 + $0x88] sm:$0xff]
            %v683 = vld [vmem:[%s664 + $0x90] sm:$0xff]
            %v684 = vld [vmem:[%s664 + $0x98] sm:$0xff]
            %v685 = vld [vmem:[%s664 + $0xa0] sm:$0xff]
            %v686 = vld [vmem:[%s664 + $0xa8] sm:$0xff]
            %v687 = vld [vmem:[%s664 + $0xb0] sm:$0xff]
            %v688 = vld [vmem:[%s664 + $0xb8] sm:$0xff]
            %v689 = vld [vmem:[%s664 + $0xc0] sm:$0xff]
            %v690 = vld [vmem:[%s664 + $0xc8] sm:$0xff]
            %v691 = vld [vmem:[%s664 + $0xd0] sm:$0xff]
            %v692 = vld [vmem:[%s664 + $0xd8] sm:$0xff]
            %v693 = vld [vmem:[%s664 + $0xe0] sm:$0xff]
            %v694 = vld [vmem:[%s664 + $0xe8] sm:$0xff]
            %v695 = vld [vmem:[%s664 + $0xf0] sm:$0xff]
            %v696 = vld [vmem:[%s664 + $0xf8] sm:$0xff]
            %v697 = vadd.f32 %v665, %v499
            %v698 = vadd.f32 %v666, %v502
            %v699 = vadd.f32 %v667, %v507
            %v700 = vadd.f32 %v668, %v510
            %v701 = vadd.f32 %v669, %v515
            %v702 = vadd.f32 %v670, %v518
            %v703 = vadd.f32 %v671, %v523
            %v704 = vadd.f32 %v672, %v526
            %v705 = vadd.f32 %v673, %v531
            %v706 = vadd.f32 %v674, %v534
            %v707 = vadd.f32 %v675, %v539
            %v708 = vadd.f32 %v676, %v542
            %v709 = vadd.f32 %v677, %v547
            %v710 = vadd.f32 %v678, %v550
            %v711 = vadd.f32 %v679, %v555
            %v712 = vadd.f32 %v680, %v558
            %v713 = vadd.f32 %v681, %v563
            %v714 = vadd.f32 %v682, %v566
            %v715 = vadd.f32 %v683, %v571
            %v716 = vadd.f32 %v684, %v574
            %v717 = vadd.f32 %v685, %v579
            %v718 = vadd.f32 %v686, %v582
            %v719 = vadd.f32 %v687, %v587
            %v720 = vadd.f32 %v688, %v590
            %v721 = vadd.f32 %v689, %v595
            %v722 = vadd.f32 %v690, %v598
            %v723 = vadd.f32 %v691, %v603
            %v724 = vadd.f32 %v692, %v606
            %v725 = vadd.f32 %v693, %v611
            %v726 = vadd.f32 %v694, %v614
            %v727 = vadd.f32 %v695, %v619
            %v728 = vadd.f32 %v696, %v622
            %s729 = scalar_lea.vmem [#allocation4], %s169
            %730 = vst [vmem:[%s729] sm:$0xff] %v697
            %731 = vst [vmem:[%s729 + $0x8] sm:$0xff] %v698
            %732 = vst [vmem:[%s729 + $0x10] sm:$0xff] %v699
            %733 = vst [vmem:[%s729 + $0x18] sm:$0xff] %v700
            %734 = vst [vmem:[%s729 + $0x20] sm:$0xff] %v701
            %735 = vst [vmem:[%s729 + $0x28] sm:$0xff] %v702
            %736 = vst [vmem:[%s729 + $0x30] sm:$0xff] %v703
            %737 = vst [vmem:[%s729 + $0x38] sm:$0xff] %v704
            %738 = vst [vmem:[%s729 + $0x40] sm:$0xff] %v705
            %739 = vst [vmem:[%s729 + $0x48] sm:$0xff] %v706
            %740 = vst [vmem:[%s729 + $0x50] sm:$0xff] %v707
            %741 = vst [vmem:[%s729 + $0x58] sm:$0xff] %v708
            %742 = vst [vmem:[%s729 + $0x60] sm:$0xff] %v709
            %743 = vst [vmem:[%s729 + $0x68] sm:$0xff] %v710
            %744 = vst [vmem:[%s729 + $0x70] sm:$0xff] %v711
            %745 = vst [vmem:[%s729 + $0x78] sm:$0xff] %v712
            %746 = vst [vmem:[%s729 + $0x80] sm:$0xff] %v713
            %747 = vst [vmem:[%s729 + $0x88] sm:$0xff] %v714
            %748 = vst [vmem:[%s729 + $0x90] sm:$0xff] %v715
            %749 = vst [vmem:[%s729 + $0x98] sm:$0xff] %v716
            %750 = vst [vmem:[%s729 + $0xa0] sm:$0xff] %v717
            %751 = vst [vmem:[%s729 + $0xa8] sm:$0xff] %v718
            %752 = vst [vmem:[%s729 + $0xb0] sm:$0xff] %v719
            %753 = vst [vmem:[%s729 + $0xb8] sm:$0xff] %v720
            %754 = vst [vmem:[%s729 + $0xc0] sm:$0xff] %v721
            %755 = vst [vmem:[%s729 + $0xc8] sm:$0xff] %v722
            %756 = vst [vmem:[%s729 + $0xd0] sm:$0xff] %v723
            %757 = vst [vmem:[%s729 + $0xd8] sm:$0xff] %v724
            %758 = vst [vmem:[%s729 + $0xe0] sm:$0xff] %v725
            %759 = vst [vmem:[%s729 + $0xe8] sm:$0xff] %v726
            %760 = vst [vmem:[%s729 + $0xf0] sm:$0xff] %v727
            %761 = vst [vmem:[%s729 + $0xf8] sm:$0xff] %v728
          $region48: #{tpu_custom_call.1} parent=43 // pred_fallthru
            _
          %p762 = scmp.gt.s32.totalorder %s20, 0
          // Predicated region
          $region49: #{tpu_custom_call.1} parent=43 // pred_check
            %p763 = pneg %p762
          $region50: #{tpu_custom_call.1} parent=43 // pred_check_branch
            %765 = sbr.rel (%p763) target = $region52
          $region51: #{tpu_custom_call.1} parent=43 // pred_region
            %s766 = scalar_lea.vmem [#allocation4], %s169
            %v767 = vld [vmem:[%s766] sm:$0xff]
            %v768 = vld [vmem:[%s766 + $0x8] sm:$0xff]
            %v769 = vld [vmem:[%s766 + $0x10] sm:$0xff]
            %v770 = vld [vmem:[%s766 + $0x18] sm:$0xff]
            %v771 = vld [vmem:[%s766 + $0x20] sm:$0xff]
            %v772 = vld [vmem:[%s766 + $0x28] sm:$0xff]
            %v773 = vld [vmem:[%s766 + $0x30] sm:$0xff]
            %v774 = vld [vmem:[%s766 + $0x38] sm:$0xff]
            %v775 = vld [vmem:[%s766 + $0x40] sm:$0xff]
            %v776 = vld [vmem:[%s766 + $0x48] sm:$0xff]
            %v777 = vld [vmem:[%s766 + $0x50] sm:$0xff]
            %v778 = vld [vmem:[%s766 + $0x58] sm:$0xff]
            %v779 = vld [vmem:[%s766 + $0x60] sm:$0xff]
            %v780 = vld [vmem:[%s766 + $0x68] sm:$0xff]
            %v781 = vld [vmem:[%s766 + $0x70] sm:$0xff]
            %v782 = vld [vmem:[%s766 + $0x78] sm:$0xff]
            %v783 = vld [vmem:[%s766 + $0x80] sm:$0xff]
            %v784 = vld [vmem:[%s766 + $0x88] sm:$0xff]
            %v785 = vld [vmem:[%s766 + $0x90] sm:$0xff]
            %v786 = vld [vmem:[%s766 + $0x98] sm:$0xff]
            %v787 = vld [vmem:[%s766 + $0xa0] sm:$0xff]
            %v788 = vld [vmem:[%s766 + $0xa8] sm:$0xff]
            %v789 = vld [vmem:[%s766 + $0xb0] sm:$0xff]
            %v790 = vld [vmem:[%s766 + $0xb8] sm:$0xff]
            %v791 = vld [vmem:[%s766 + $0xc0] sm:$0xff]
            %v792 = vld [vmem:[%s766 + $0xc8] sm:$0xff]
            %v793 = vld [vmem:[%s766 + $0xd0] sm:$0xff]
            %v794 = vld [vmem:[%s766 + $0xd8] sm:$0xff]
            %v795 = vld [vmem:[%s766 + $0xe0] sm:$0xff]
            %v796 = vld [vmem:[%s766 + $0xe8] sm:$0xff]
            %v797 = vld [vmem:[%s766 + $0xf0] sm:$0xff]
            %v798 = vld [vmem:[%s766 + $0xf8] sm:$0xff]
            %v799 = vadd.f32 %v767, %v499
            %v800 = vadd.f32 %v768, %v502
            %v801 = vadd.f32 %v769, %v507
            %v802 = vadd.f32 %v770, %v510
            %v803 = vadd.f32 %v771, %v515
            %v804 = vadd.f32 %v772, %v518
            %v805 = vadd.f32 %v773, %v523
            %v806 = vadd.f32 %v774, %v526
            %v807 = vadd.f32 %v775, %v531
            %v808 = vadd.f32 %v776, %v534
            %v809 = vadd.f32 %v777, %v539
            %v810 = vadd.f32 %v778, %v542
            %v811 = vadd.f32 %v779, %v547
            %v812 = vadd.f32 %v780, %v550
            %v813 = vadd.f32 %v781, %v555
            %v814 = vadd.f32 %v782, %v558
            %v815 = vadd.f32 %v783, %v563
            %v816 = vadd.f32 %v784, %v566
            %v817 = vadd.f32 %v785, %v571
            %v818 = vadd.f32 %v786, %v574
            %v819 = vadd.f32 %v787, %v579
            %v820 = vadd.f32 %v788, %v582
            %v821 = vadd.f32 %v789, %v587
            %v822 = vadd.f32 %v790, %v590
            %v823 = vadd.f32 %v791, %v595
            %v824 = vadd.f32 %v792, %v598
            %v825 = vadd.f32 %v793, %v603
            %v826 = vadd.f32 %v794, %v606
            %v827 = vadd.f32 %v795, %v611
            %v828 = vadd.f32 %v796, %v614
            %v829 = vadd.f32 %v797, %v619
            %v830 = vadd.f32 %v798, %v622
            %831 = vst [vmem:[%s766] sm:$0xff] %v799
            %832 = vst [vmem:[%s766 + $0x8] sm:$0xff] %v800
            %833 = vst [vmem:[%s766 + $0x10] sm:$0xff] %v801
            %834 = vst [vmem:[%s766 + $0x18] sm:$0xff] %v802
            %835 = vst [vmem:[%s766 + $0x20] sm:$0xff] %v803
            %836 = vst [vmem:[%s766 + $0x28] sm:$0xff] %v804
            %837 = vst [vmem:[%s766 + $0x30] sm:$0xff] %v805
            %838 = vst [vmem:[%s766 + $0x38] sm:$0xff] %v806
            %839 = vst [vmem:[%s766 + $0x40] sm:$0xff] %v807
            %840 = vst [vmem:[%s766 + $0x48] sm:$0xff] %v808
            %841 = vst [vmem:[%s766 + $0x50] sm:$0xff] %v809
            %842 = vst [vmem:[%s766 + $0x58] sm:$0xff] %v810
            %843 = vst [vmem:[%s766 + $0x60] sm:$0xff] %v811
            %844 = vst [vmem:[%s766 + $0x68] sm:$0xff] %v812
            %845 = vst [vmem:[%s766 + $0x70] sm:$0xff] %v813
            %846 = vst [vmem:[%s766 + $0x78] sm:$0xff] %v814
            %847 = vst [vmem:[%s766 + $0x80] sm:$0xff] %v815
            %848 = vst [vmem:[%s766 + $0x88] sm:$0xff] %v816
            %849 = vst [vmem:[%s766 + $0x90] sm:$0xff] %v817
            %850 = vst [vmem:[%s766 + $0x98] sm:$0xff] %v818
            %851 = vst [vmem:[%s766 + $0xa0] sm:$0xff] %v819
            %852 = vst [vmem:[%s766 + $0xa8] sm:$0xff] %v820
            %853 = vst [vmem:[%s766 + $0xb0] sm:$0xff] %v821
            %854 = vst [vmem:[%s766 + $0xb8] sm:$0xff] %v822
            %855 = vst [vmem:[%s766 + $0xc0] sm:$0xff] %v823
            %856 = vst [vmem:[%s766 + $0xc8] sm:$0xff] %v824
            %857 = vst [vmem:[%s766 + $0xd0] sm:$0xff] %v825
            %858 = vst [vmem:[%s766 + $0xd8] sm:$0xff] %v826
            %859 = vst [vmem:[%s766 + $0xe0] sm:$0xff] %v827
            %860 = vst [vmem:[%s766 + $0xe8] sm:$0xff] %v828
            %861 = vst [vmem:[%s766 + $0xf0] sm:$0xff] %v829
            %862 = vst [vmem:[%s766 + $0xf8] sm:$0xff] %v830
          $region52: #{tpu_custom_call.1} parent=43 // pred_fallthru
            _
          %p863 = scmp.eq.s32.totalorder %s20, 1
          // Predicated region
          $region53: #{tpu_custom_call.1} parent=43 // pred_check
            %p864 = pneg %p863
          $region54: #{tpu_custom_call.1} parent=43 // pred_check_branch
            %866 = sbr.rel (%p864) target = $region56
          $region55: #{tpu_custom_call.1} parent=43 // pred_region
            %s867 = scalar_lea.vmem [#allocation4], %s169
            %v868 = vld [vmem:[%s867] sm:$0xff]
            %v869 = vld [vmem:[%s867 + $0x8] sm:$0xff]
            %v870 = vld [vmem:[%s867 + $0x10] sm:$0xff]
            %v871 = vld [vmem:[%s867 + $0x18] sm:$0xff]
            %v872 = vld [vmem:[%s867 + $0x20] sm:$0xff]
            %v873 = vld [vmem:[%s867 + $0x28] sm:$0xff]
            %v874 = vld [vmem:[%s867 + $0x30] sm:$0xff]
            %v875 = vld [vmem:[%s867 + $0x38] sm:$0xff]
            %v876 = vld [vmem:[%s867 + $0x40] sm:$0xff]
            %v877 = vld [vmem:[%s867 + $0x48] sm:$0xff]
            %v878 = vld [vmem:[%s867 + $0x50] sm:$0xff]
            %v879 = vld [vmem:[%s867 + $0x58] sm:$0xff]
            %v880 = vld [vmem:[%s867 + $0x60] sm:$0xff]
            %v881 = vld [vmem:[%s867 + $0x68] sm:$0xff]
            %v882 = vld [vmem:[%s867 + $0x70] sm:$0xff]
            %v883 = vld [vmem:[%s867 + $0x78] sm:$0xff]
            %v884 = vld [vmem:[%s867 + $0x80] sm:$0xff]
            %v885 = vld [vmem:[%s867 + $0x88] sm:$0xff]
            %v886 = vld [vmem:[%s867 + $0x90] sm:$0xff]
            %v887 = vld [vmem:[%s867 + $0x98] sm:$0xff]
            %v888 = vld [vmem:[%s867 + $0xa0] sm:$0xff]
            %v889 = vld [vmem:[%s867 + $0xa8] sm:$0xff]
            %v890 = vld [vmem:[%s867 + $0xb0] sm:$0xff]
            %v891 = vld [vmem:[%s867 + $0xb8] sm:$0xff]
            %v892 = vld [vmem:[%s867 + $0xc0] sm:$0xff]
            %v893 = vld [vmem:[%s867 + $0xc8] sm:$0xff]
            %v894 = vld [vmem:[%s867 + $0xd0] sm:$0xff]
            %v895 = vld [vmem:[%s867 + $0xd8] sm:$0xff]
            %v896 = vld [vmem:[%s867 + $0xe0] sm:$0xff]
            %v897 = vld [vmem:[%s867 + $0xe8] sm:$0xff]
            %v898 = vld [vmem:[%s867 + $0xf0] sm:$0xff]
            %v899 = vld [vmem:[%s867 + $0xf8] sm:$0xff]
            %v900 = vmul.f32 %v868, 0.33333334
            %v901 = vmul.f32 %v869, 0.33333334
            %v902 = vmul.f32 %v870, 0.33333334
            %v903 = vmul.f32 %v871, 0.33333334
            %v904 = vmul.f32 %v872, 0.33333334
            %v905 = vmul.f32 %v873, 0.33333334
            %v906 = vmul.f32 %v874, 0.33333334
            %v907 = vmul.f32 %v875, 0.33333334
            %v908 = vmul.f32 %v876, 0.33333334
            %v909 = vmul.f32 %v877, 0.33333334
            %v910 = vmul.f32 %v878, 0.33333334
            %v911 = vmul.f32 %v879, 0.33333334
            %v912 = vmul.f32 %v880, 0.33333334
            %v913 = vmul.f32 %v881, 0.33333334
            %v914 = vmul.f32 %v882, 0.33333334
            %v915 = vmul.f32 %v883, 0.33333334
            %v916 = vmul.f32 %v884, 0.33333334
            %v917 = vmul.f32 %v885, 0.33333334
            %v918 = vmul.f32 %v886, 0.33333334
            %v919 = vmul.f32 %v887, 0.33333334
            %v920 = vmul.f32 %v888, 0.33333334
            %v921 = vmul.f32 %v889, 0.33333334
            %v922 = vmul.f32 %v890, 0.33333334
            %v923 = vmul.f32 %v891, 0.33333334
            %v924 = vmul.f32 %v892, 0.33333334
            %v925 = vmul.f32 %v893, 0.33333334
            %v926 = vmul.f32 %v894, 0.33333334
            %v927 = vmul.f32 %v895, 0.33333334
            %v928 = vmul.f32 %v896, 0.33333334
            %v929 = vmul.f32 %v897, 0.33333334
            %v930 = vmul.f32 %v898, 0.33333334
            %v931 = vmul.f32 %v899, 0.33333334
            %932 = vst [vmem:[#allocation10] sm:$0xff] %v900
            %933 = vst [vmem:[#allocation10 + $0x8] sm:$0xff] %v901
            %934 = vst [vmem:[#allocation10 + $0x10] sm:$0xff] %v902
            %935 = vst [vmem:[#allocation10 + $0x18] sm:$0xff] %v903
            %936 = vst [vmem:[#allocation10 + $0x20] sm:$0xff] %v904
            %937 = vst [vmem:[#allocation10 + $0x28] sm:$0xff] %v905
            %938 = vst [vmem:[#allocation10 + $0x30] sm:$0xff] %v906
            %939 = vst [vmem:[#allocation10 + $0x38] sm:$0xff] %v907
            %940 = vst [vmem:[#allocation10 + $0x40] sm:$0xff] %v908
            %941 = vst [vmem:[#allocation10 + $0x48] sm:$0xff] %v909
            %942 = vst [vmem:[#allocation10 + $0x50] sm:$0xff] %v910
            %943 = vst [vmem:[#allocation10 + $0x58] sm:$0xff] %v911
            %944 = vst [vmem:[#allocation10 + $0x60] sm:$0xff] %v912
            %945 = vst [vmem:[#allocation10 + $0x68] sm:$0xff] %v913
            %946 = vst [vmem:[#allocation10 + $0x70] sm:$0xff] %v914
            %947 = vst [vmem:[#allocation10 + $0x78] sm:$0xff] %v915
            %948 = vst [vmem:[#allocation10 + $0x80] sm:$0xff] %v916
            %949 = vst [vmem:[#allocation10 + $0x88] sm:$0xff] %v917
            %950 = vst [vmem:[#allocation10 + $0x90] sm:$0xff] %v918
            %951 = vst [vmem:[#allocation10 + $0x98] sm:$0xff] %v919
            %952 = vst [vmem:[#allocation10 + $0xa0] sm:$0xff] %v920
            %953 = vst [vmem:[#allocation10 + $0xa8] sm:$0xff] %v921
            %954 = vst [vmem:[#allocation10 + $0xb0] sm:$0xff] %v922
            %955 = vst [vmem:[#allocation10 + $0xb8] sm:$0xff] %v923
            %956 = vst [vmem:[#allocation10 + $0xc0] sm:$0xff] %v924
            %957 = vst [vmem:[#allocation10 + $0xc8] sm:$0xff] %v925
            %958 = vst [vmem:[#allocation10 + $0xd0] sm:$0xff] %v926
            %959 = vst [vmem:[#allocation10 + $0xd8] sm:$0xff] %v927
            %960 = vst [vmem:[#allocation10 + $0xe0] sm:$0xff] %v928
            %961 = vst [vmem:[#allocation10 + $0xe8] sm:$0xff] %v929
            %962 = vst [vmem:[#allocation10 + $0xf0] sm:$0xff] %v930
            %963 = vst [vmem:[#allocation10 + $0xf8] sm:$0xff] %v931
          $region56: #{tpu_custom_call.1} parent=43 // pred_fallthru
            _
        $region44: #{tpu_custom_call.1} parent=27 // pred_fallthru
          _
        %p964 = scmp.eq.s32.totalorder %s251, 1
        // Predicated region
        $region57: #{tpu_custom_call.1} parent=27 // pred_check
          %p965 = pneg %p964
        $region58: #{tpu_custom_call.1} parent=27 // pred_check_branch
          %967 = sbr.rel (%p965) target = $region60
        $region59: #{tpu_custom_call.1} parent=27 // pred_region
          %v968 = vld [vmem:[#allocation8] sm:$0xff]
          %v969 = vld [vmem:[#allocation8 + $0x8] sm:$0xff]
          %v970 = vld [vmem:[#allocation8 + $0x10] sm:$0xff]
          %v971 = vld [vmem:[#allocation8 + $0x18] sm:$0xff]
          %v972 = vld [vmem:[#allocation8 + $0x20] sm:$0xff]
          %v973 = vld [vmem:[#allocation8 + $0x28] sm:$0xff]
          %v974 = vld [vmem:[#allocation8 + $0x30] sm:$0xff]
          %v975 = vld [vmem:[#allocation8 + $0x38] sm:$0xff]
          %v976 = vld [vmem:[#allocation8 + $0x40] sm:$0xff]
          %v977 = vld [vmem:[#allocation8 + $0x48] sm:$0xff]
          %v978 = vld [vmem:[#allocation8 + $0x50] sm:$0xff]
          %v979 = vld [vmem:[#allocation8 + $0x58] sm:$0xff]
          %v980 = vld [vmem:[#allocation8 + $0x60] sm:$0xff]
          %v981 = vld [vmem:[#allocation8 + $0x68] sm:$0xff]
          %v982 = vld [vmem:[#allocation8 + $0x70] sm:$0xff]
          %v983 = vld [vmem:[#allocation8 + $0x78] sm:$0xff]
          %v984 = vld [vmem:[#allocation8 + $0x80] sm:$0xff]
          %v985 = vld [vmem:[#allocation8 + $0x88] sm:$0xff]
          %v986 = vld [vmem:[#allocation8 + $0x90] sm:$0xff]
          %v987 = vld [vmem:[#allocation8 + $0x98] sm:$0xff]
          %v988 = vld [vmem:[#allocation8 + $0xa0] sm:$0xff]
          %v989 = vld [vmem:[#allocation8 + $0xa8] sm:$0xff]
          %v990 = vld [vmem:[#allocation8 + $0xb0] sm:$0xff]
          %v991 = vld [vmem:[#allocation8 + $0xb8] sm:$0xff]
          %v992 = vld [vmem:[#allocation8 + $0xc0] sm:$0xff]
          %v993 = vld [vmem:[#allocation8 + $0xc8] sm:$0xff]
          %v994 = vld [vmem:[#allocation8 + $0xd0] sm:$0xff]
          %v995 = vld [vmem:[#allocation8 + $0xd8] sm:$0xff]
          %v996 = vld [vmem:[#allocation8 + $0xe0] sm:$0xff]
          %v997 = vld [vmem:[#allocation8 + $0xe8] sm:$0xff]
          %v998 = vld [vmem:[#allocation8 + $0xf0] sm:$0xff]
          %v999 = vld [vmem:[#allocation8 + $0xf8] sm:$0xff]
          %v1000 = vld [vmem:[#allocation3] sm:$0xff]
          %v1001 = vld [vmem:[#allocation3 + $0x8] sm:$0xff]
          %v1002 = vld [vmem:[#allocation3 + $0x10] sm:$0xff]
          %v1003 = vld [vmem:[#allocation3 + $0x18] sm:$0xff]
          %v1004 = vld [vmem:[#allocation3 + $0x20] sm:$0xff]
          %v1005 = vld [vmem:[#allocation3 + $0x28] sm:$0xff]
          %v1006 = vld [vmem:[#allocation3 + $0x30] sm:$0xff]
          %v1007 = vld [vmem:[#allocation3 + $0x38] sm:$0xff]
          %v1008 = vld [vmem:[#allocation3 + $0x40] sm:$0xff]
          %v1009 = vld [vmem:[#allocation3 + $0x48] sm:$0xff]
          %v1010 = vld [vmem:[#allocation3 + $0x50] sm:$0xff]
          %v1011 = vld [vmem:[#allocation3 + $0x58] sm:$0xff]
          %v1012 = vld [vmem:[#allocation3 + $0x60] sm:$0xff]
          %v1013 = vld [vmem:[#allocation3 + $0x68] sm:$0xff]
          %v1014 = vld [vmem:[#allocation3 + $0x70] sm:$0xff]
          %v1015 = vld [vmem:[#allocation3 + $0x78] sm:$0xff]
          %v1048 = vunpack.c.l.b16 %v968
          %v1049 = vunpack.c.h.b16 %v968
          %v1050 = vunpack.c.l.b16 %v969
          %v1051 = vunpack.c.h.b16 %v969
          %v1052 = vunpack.c.l.b16 %v970
          %v1053 = vunpack.c.h.b16 %v970
          %v1054 = vunpack.c.l.b16 %v971
          %v1055 = vunpack.c.h.b16 %v971
          %v1056 = vunpack.c.l.b16 %v972
          %v1057 = vunpack.c.h.b16 %v972
          %v1058 = vunpack.c.l.b16 %v973
          %v1059 = vunpack.c.h.b16 %v973
          %v1060 = vunpack.c.l.b16 %v974
          %v1061 = vunpack.c.h.b16 %v974
          %v1062 = vunpack.c.l.b16 %v975
          %v1063 = vunpack.c.h.b16 %v975
          %v1064 = vunpack.c.l.b16 %v976
          %v1065 = vunpack.c.h.b16 %v976
          %v1066 = vunpack.c.l.b16 %v977
          %v1067 = vunpack.c.h.b16 %v977
          %v1068 = vunpack.c.l.b16 %v978
          %v1069 = vunpack.c.h.b16 %v978
          %v1070 = vunpack.c.l.b16 %v979
          %v1071 = vunpack.c.h.b16 %v979
          %v1072 = vunpack.c.l.b16 %v980
          %v1073 = vunpack.c.h.b16 %v980
          %v1074 = vunpack.c.l.b16 %v981
          %v1075 = vunpack.c.h.b16 %v981
          %v1076 = vunpack.c.l.b16 %v982
          %v1077 = vunpack.c.h.b16 %v982
          %v1078 = vunpack.c.l.b16 %v983
          %v1079 = vunpack.c.h.b16 %v983
          %v1080 = vunpack.c.l.b16 %v984
          %v1081 = vunpack.c.h.b16 %v984
          %v1082 = vunpack.c.l.b16 %v985
          %v1083 = vunpack.c.h.b16 %v985
          %v1084 = vunpack.c.l.b16 %v986
          %v1085 = vunpack.c.h.b16 %v986
          %v1086 = vunpack.c.l.b16 %v987
          %v1087 = vunpack.c.h.b16 %v987
          %v1088 = vunpack.c.l.b16 %v988
          %v1089 = vunpack.c.h.b16 %v988
          %v1090 = vunpack.c.l.b16 %v989
          %v1091 = vunpack.c.h.b16 %v989
          %v1092 = vunpack.c.l.b16 %v990
          %v1093 = vunpack.c.h.b16 %v990
          %v1094 = vunpack.c.l.b16 %v991
          %v1095 = vunpack.c.h.b16 %v991
          %v1096 = vunpack.c.l.b16 %v992
          %v1097 = vunpack.c.h.b16 %v992
          %v1098 = vunpack.c.l.b16 %v993
          %v1099 = vunpack.c.h.b16 %v993
          %v1100 = vunpack.c.l.b16 %v994
          %v1101 = vunpack.c.h.b16 %v994
          %v1102 = vunpack.c.l.b16 %v995
          %v1103 = vunpack.c.h.b16 %v995
          %v1104 = vunpack.c.l.b16 %v996
          %v1105 = vunpack.c.h.b16 %v996
          %v1106 = vunpack.c.l.b16 %v997
          %v1107 = vunpack.c.h.b16 %v997
          %v1108 = vunpack.c.l.b16 %v998
          %v1109 = vunpack.c.h.b16 %v998
          %v1110 = vunpack.c.l.b16 %v999
          %v1111 = vunpack.c.h.b16 %v999
          %v1112 = vpack.c.b16 %v1050, %v1048
          %v1113 = vpack.c.b16 %v1051, %v1049
          %v1114 = vpack.c.b16 %v1054, %v1052
          %v1115 = vpack.c.b16 %v1055, %v1053
          %v1116 = vpack.c.b16 %v1058, %v1056
          %v1117 = vpack.c.b16 %v1059, %v1057
          %v1118 = vpack.c.b16 %v1062, %v1060
          %v1119 = vpack.c.b16 %v1063, %v1061
          %v1120 = vpack.c.b16 %v1066, %v1064
          %v1121 = vpack.c.b16 %v1067, %v1065
          %v1122 = vpack.c.b16 %v1070, %v1068
          %v1123 = vpack.c.b16 %v1071, %v1069
          %v1124 = vpack.c.b16 %v1074, %v1072
          %v1125 = vpack.c.b16 %v1075, %v1073
          %v1126 = vpack.c.b16 %v1078, %v1076
          %v1127 = vpack.c.b16 %v1079, %v1077
          %v1128 = vpack.c.b16 %v1082, %v1080
          %v1129 = vpack.c.b16 %v1083, %v1081
          %v1130 = vpack.c.b16 %v1086, %v1084
          %v1131 = vpack.c.b16 %v1087, %v1085
          %v1132 = vpack.c.b16 %v1090, %v1088
          %v1133 = vpack.c.b16 %v1091, %v1089
          %v1134 = vpack.c.b16 %v1094, %v1092
          %v1135 = vpack.c.b16 %v1095, %v1093
          %v1136 = vpack.c.b16 %v1098, %v1096
          %v1137 = vpack.c.b16 %v1099, %v1097
          %v1138 = vpack.c.b16 %v1102, %v1100
          %v1139 = vpack.c.b16 %v1103, %v1101
          %v1140 = vpack.c.b16 %v1106, %v1104
          %v1141 = vpack.c.b16 %v1107, %v1105
          %v1142 = vpack.c.b16 %v1110, %v1108
          %v1143 = vpack.c.b16 %v1111, %v1109
          %1176 = vmatprep.subr.bf16.mxu0 0
          %1177 = vmatpush1.bf16.msra.mxu0 %v1000
          %1178 = vmatprep.subr.bf16.mxu0 0
          %1179 = vmatpush1.bf16.msra.mxu0 %v1001
          %1180 = vmatprep.subr.bf16.mxu0 0
          %1181 = vmatpush1.bf16.msra.mxu0 %v1002
          %1182 = vmatprep.subr.bf16.mxu0 0
          %1183 = vmatpush1.bf16.msra.mxu0 %v1003
          %1184 = vmatprep.subr.bf16.mxu0 0
          %1185 = vmatpush1.bf16.msra.mxu0 %v1004
          %1186 = vmatprep.subr.bf16.mxu0 0
          %1187 = vmatpush1.bf16.msra.mxu0 %v1005
          %1188 = vmatprep.subr.bf16.mxu0 0
          %1189 = vmatpush1.bf16.msra.mxu0 %v1006
          %1190 = vmatprep.subr.bf16.mxu0 0
          %1191 = vmatpush1.bf16.msra.mxu0 %v1007
          %1192 = vmatprep.subr.bf16.mxu0 0
          %1193 = vmatpush1.bf16.msra.mxu0 %v1008
          %1194 = vmatprep.subr.bf16.mxu0 0
          %1195 = vmatpush1.bf16.msra.mxu0 %v1009
          %1196 = vmatprep.subr.bf16.mxu0 0
          %1197 = vmatpush1.bf16.msra.mxu0 %v1010
          %1198 = vmatprep.subr.bf16.mxu0 0
          %1199 = vmatpush1.bf16.msra.mxu0 %v1011
          %1200 = vmatprep.subr.bf16.mxu0 0
          %1201 = vmatpush1.bf16.msra.mxu0 %v1012
          %1202 = vmatprep.subr.bf16.mxu0 0
          %1203 = vmatpush1.bf16.msra.mxu0 %v1013
          %1204 = vmatprep.subr.bf16.mxu0 0
          %1205 = vmatpush1.bf16.msra.mxu0 %v1014
          %1206 = vmatprep.subr.bf16.mxu0 0
          %1207 = vmatpush1.bf16.msra.mxu0 %v1015
          %1208 = vmatprep.mubr.bf16.mxu0 %v1113
          %1209 = vmatmul.mubr.bf16.gmra.mrb[0].mxu0 %v1112
          %v1210 = vpop.f32.mrb[0].mxu0
          %v1211 = vadd.f32 0.0, %v1210
          %v1212 = vpop.f32.mrb[0].mxu0
          %v1213 = vpop.f32.mrb[0].mxu0
          %v1214 = vadd.f32 0.0, %v1213
          %v1215 = vpop.f32.mrb[0].mxu0
          %1216 = vmatprep.mubr.bf16.mxu0 %v1115
          %1217 = vmatmul.mubr.bf16.gmra.mrb[0].mxu0 %v1114
          %v1218 = vpop.f32.mrb[0].mxu0
          %v1219 = vadd.f32 0.0, %v1218
          %v1220 = vpop.f32.mrb[0].mxu0
          %v1221 = vpop.f32.mrb[0].mxu0
          %v1222 = vadd.f32 0.0, %v1221
          %v1223 = vpop.f32.mrb[0].mxu0
          %1224 = vmatprep.mubr.bf16.mxu0 %v1117
          %1225 = vmatmul.mubr.bf16.gmra.mrb[0].mxu0 %v1116
          %v1226 = vpop.f32.mrb[0].mxu0
          %v1227 = vadd.f32 0.0, %v1226
          %v1228 = vpop.f32.mrb[0].mxu0
          %v1229 = vpop.f32.mrb[0].mxu0
          %v1230 = vadd.f32 0.0, %v1229
          %v1231 = vpop.f32.mrb[0].mxu0
          %1232 = vmatprep.mubr.bf16.mxu0 %v1119
          %1233 = vmatmul.mubr.bf16.gmra.mrb[0].mxu0 %v1118
          %v1234 = vpop.f32.mrb[0].mxu0
          %v1235 = vadd.f32 0.0, %v1234
          %v1236 = vpop.f32.mrb[0].mxu0
          %v1237 = vpop.f32.mrb[0].mxu0
          %v1238 = vadd.f32 0.0, %v1237
          %v1239 = vpop.f32.mrb[0].mxu0
          %1240 = vmatprep.mubr.bf16.mxu0 %v1121
          %1241 = vmatmul.mubr.bf16.gmra.mrb[0].mxu0 %v1120
          %v1242 = vpop.f32.mrb[0].mxu0
          %v1243 = vadd.f32 0.0, %v1242
          %v1244 = vpop.f32.mrb[0].mxu0
          %v1245 = vpop.f32.mrb[0].mxu0
          %v1246 = vadd.f32 0.0, %v1245
          %v1247 = vpop.f32.mrb[0].mxu0
          %1248 = vmatprep.mubr.bf16.mxu0 %v1123
          %1249 = vmatmul.mubr.bf16.gmra.mrb[0].mxu0 %v1122
          %v1250 = vpop.f32.mrb[0].mxu0
          %v1251 = vadd.f32 0.0, %v1250
          %v1252 = vpop.f32.mrb[0].mxu0
          %v1253 = vpop.f32.mrb[0].mxu0
          %v1254 = vadd.f32 0.0, %v1253
          %v1255 = vpop.f32.mrb[0].mxu0
          %1256 = vmatprep.mubr.bf16.mxu0 %v1125
          %1257 = vmatmul.mubr.bf16.gmra.mrb[0].mxu0 %v1124
          %v1258 = vpop.f32.mrb[0].mxu0
          %v1259 = vadd.f32 0.0, %v1258
          %v1260 = vpop.f32.mrb[0].mxu0
          %v1261 = vpop.f32.mrb[0].mxu0
          %v1262 = vadd.f32 0.0, %v1261
          %v1263 = vpop.f32.mrb[0].mxu0
          %1264 = vmatprep.mubr.bf16.mxu0 %v1127
          %1265 = vmatmul.mubr.bf16.gmra.mrb[0].mxu0 %v1126
          %v1266 = vpop.f32.mrb[0].mxu0
          %v1267 = vadd.f32 0.0, %v1266
          %v1268 = vpop.f32.mrb[0].mxu0
          %v1269 = vpop.f32.mrb[0].mxu0
          %v1270 = vadd.f32 0.0, %v1269
          %v1271 = vpop.f32.mrb[0].mxu0
          %1272 = vmatprep.mubr.bf16.mxu0 %v1129
          %1273 = vmatmul.mubr.bf16.gmra.mrb[0].mxu0 %v1128
          %v1274 = vpop.f32.mrb[0].mxu0
          %v1275 = vadd.f32 0.0, %v1274
          %v1276 = vpop.f32.mrb[0].mxu0
          %v1277 = vpop.f32.mrb[0].mxu0
          %v1278 = vadd.f32 0.0, %v1277
          %v1279 = vpop.f32.mrb[0].mxu0
          %1280 = vmatprep.mubr.bf16.mxu0 %v1131
          %1281 = vmatmul.mubr.bf16.gmra.mrb[0].mxu0 %v1130
          %v1282 = vpop.f32.mrb[0].mxu0
          %v1283 = vadd.f32 0.0, %v1282
          %v1284 = vpop.f32.mrb[0].mxu0
          %v1285 = vpop.f32.mrb[0].mxu0
          %v1286 = vadd.f32 0.0, %v1285
          %v1287 = vpop.f32.mrb[0].mxu0
          %1288 = vmatprep.mubr.bf16.mxu0 %v1133
          %1289 = vmatmul.mubr.bf16.gmra.mrb[0].mxu0 %v1132
          %v1290 = vpop.f32.mrb[0].mxu0
          %v1291 = vadd.f32 0.0, %v1290
          %v1292 = vpop.f32.mrb[0].mxu0
          %v1293 = vpop.f32.mrb[0].mxu0
          %v1294 = vadd.f32 0.0, %v1293
          %v1295 = vpop.f32.mrb[0].mxu0
          %1296 = vmatprep.mubr.bf16.mxu0 %v1135
          %1297 = vmatmul.mubr.bf16.gmra.mrb[0].mxu0 %v1134
          %v1298 = vpop.f32.mrb[0].mxu0
          %v1299 = vadd.f32 0.0, %v1298
          %v1300 = vpop.f32.mrb[0].mxu0
          %v1301 = vpop.f32.mrb[0].mxu0
          %v1302 = vadd.f32 0.0, %v1301
          %v1303 = vpop.f32.mrb[0].mxu0
          %1304 = vmatprep.mubr.bf16.mxu0 %v1137
          %1305 = vmatmul.mubr.bf16.gmra.mrb[0].mxu0 %v1136
          %v1306 = vpop.f32.mrb[0].mxu0
          %v1307 = vadd.f32 0.0, %v1306
          %v1308 = vpop.f32.mrb[0].mxu0
          %v1309 = vpop.f32.mrb[0].mxu0
          %v1310 = vadd.f32 0.0, %v1309
          %v1311 = vpop.f32.mrb[0].mxu0
          %1312 = vmatprep.mubr.bf16.mxu0 %v1139
          %1313 = vmatmul.mubr.bf16.gmra.mrb[0].mxu0 %v1138
          %v1314 = vpop.f32.mrb[0].mxu0
          %v1315 = vadd.f32 0.0, %v1314
          %v1316 = vpop.f32.mrb[0].mxu0
          %v1317 = vpop.f32.mrb[0].mxu0
          %v1318 = vadd.f32 0.0, %v1317
          %v1319 = vpop.f32.mrb[0].mxu0
          %1320 = vmatprep.mubr.bf16.mxu0 %v1141
          %1321 = vmatmul.mubr.bf16.gmra.mrb[0].mxu0 %v1140
          %v1322 = vpop.f32.mrb[0].mxu0
          %v1323 = vadd.f32 0.0, %v1322
          %v1324 = vpop.f32.mrb[0].mxu0
          %v1325 = vpop.f32.mrb[0].mxu0
          %v1326 = vadd.f32 0.0, %v1325
          %v1327 = vpop.f32.mrb[0].mxu0
          %1328 = vmatprep.mubr.bf16.mxu0 %v1143
          %1329 = vmatmul.mubr.bf16.gmra.mrb[0].mxu0 %v1142
          %v1330 = vpop.f32.mrb[0].mxu0
          %v1331 = vadd.f32 0.0, %v1330
          %v1332 = vpop.f32.mrb[0].mxu0
          %v1333 = vpop.f32.mrb[0].mxu0
          %v1334 = vadd.f32 0.0, %v1333
          %v1335 = vpop.f32.mrb[0].mxu0
          %1336 = vdwg.mxu0
          %v1337 = vpack.c.bf16 %v1214, %v1211
          %v1338 = vpack.c.bf16 %v1222, %v1219
          %v1339 = vpack.c.bf16 %v1230, %v1227
          %v1340 = vpack.c.bf16 %v1238, %v1235
          %v1341 = vpack.c.bf16 %v1246, %v1243
          %v1342 = vpack.c.bf16 %v1254, %v1251
          %v1343 = vpack.c.bf16 %v1262, %v1259
          %v1344 = vpack.c.bf16 %v1270, %v1267
          %v1345 = vpack.c.bf16 %v1278, %v1275
          %v1346 = vpack.c.bf16 %v1286, %v1283
          %v1347 = vpack.c.bf16 %v1294, %v1291
          %v1348 = vpack.c.bf16 %v1302, %v1299
          %v1349 = vpack.c.bf16 %v1310, %v1307
          %v1350 = vpack.c.bf16 %v1318, %v1315
          %v1351 = vpack.c.bf16 %v1326, %v1323
          %v1352 = vpack.c.bf16 %v1334, %v1331
          %s1353 = sshra.s32 %s169, 4
          %s1354 = sand.u32 %s169, 15
          %s1355 = smul.addr %s1353, 8
          %s1356 = scalar_lea.vmem [#allocation2], %s1355
          %1357 = vst [vmem:[%s1356] sm:$0xff] %v1337
          %1358 = vst [vmem:[%s1356 + $0x8] sm:$0xff] %v1338
          %1359 = vst [vmem:[%s1356 + $0x10] sm:$0xff] %v1339
          %1360 = vst [vmem:[%s1356 + $0x18] sm:$0xff] %v1340
          %1361 = vst [vmem:[%s1356 + $0x20] sm:$0xff] %v1341
          %1362 = vst [vmem:[%s1356 + $0x28] sm:$0xff] %v1342
          %1363 = vst [vmem:[%s1356 + $0x30] sm:$0xff] %v1343
          %1364 = vst [vmem:[%s1356 + $0x38] sm:$0xff] %v1344
          %1365 = vst [vmem:[%s1356 + $0x40] sm:$0xff] %v1345
          %1366 = vst [vmem:[%s1356 + $0x48] sm:$0xff] %v1346
          %1367 = vst [vmem:[%s1356 + $0x50] sm:$0xff] %v1347
          %1368 = vst [vmem:[%s1356 + $0x58] sm:$0xff] %v1348
          %1369 = vst [vmem:[%s1356 + $0x60] sm:$0xff] %v1349
          %1370 = vst [vmem:[%s1356 + $0x68] sm:$0xff] %v1350
          %1371 = vst [vmem:[%s1356 + $0x70] sm:$0xff] %v1351
          %1372 = vst [vmem:[%s1356 + $0x78] sm:$0xff] %v1352
          // Predicated region
          $region61: #{tpu_custom_call.1} parent=59 // pred_check
            %p1373 = pneg %p170
          $region62: #{tpu_custom_call.1} parent=59 // pred_check_branch
            %1375 = sbr.rel (%p1373) target = $region64
          $region63: #{tpu_custom_call.1} parent=59 // pred_region
            %s1376 = scalar_lea.vmem [#allocation5], %s169
            %v1377 = vld [vmem:[%s1376] sm:$0xff]
            %v1378 = vld [vmem:[%s1376 + $0x8] sm:$0xff]
            %v1379 = vld [vmem:[%s1376 + $0x10] sm:$0xff]
            %v1380 = vld [vmem:[%s1376 + $0x18] sm:$0xff]
            %v1381 = vld [vmem:[%s1376 + $0x20] sm:$0xff]
            %v1382 = vld [vmem:[%s1376 + $0x28] sm:$0xff]
            %v1383 = vld [vmem:[%s1376 + $0x30] sm:$0xff]
            %v1384 = vld [vmem:[%s1376 + $0x38] sm:$0xff]
            %v1385 = vld [vmem:[%s1376 + $0x40] sm:$0xff]
            %v1386 = vld [vmem:[%s1376 + $0x48] sm:$0xff]
            %v1387 = vld [vmem:[%s1376 + $0x50] sm:$0xff]
            %v1388 = vld [vmem:[%s1376 + $0x58] sm:$0xff]
            %v1389 = vld [vmem:[%s1376 + $0x60] sm:$0xff]
            %v1390 = vld [vmem:[%s1376 + $0x68] sm:$0xff]
            %v1391 = vld [vmem:[%s1376 + $0x70] sm:$0xff]
            %v1392 = vld [vmem:[%s1376 + $0x78] sm:$0xff]
            %v1393 = vld [vmem:[%s1376 + $0x80] sm:$0xff]
            %v1394 = vld [vmem:[%s1376 + $0x88] sm:$0xff]
            %v1395 = vld [vmem:[%s1376 + $0x90] sm:$0xff]
            %v1396 = vld [vmem:[%s1376 + $0x98] sm:$0xff]
            %v1397 = vld [vmem:[%s1376 + $0xa0] sm:$0xff]
            %v1398 = vld [vmem:[%s1376 + $0xa8] sm:$0xff]
            %v1399 = vld [vmem:[%s1376 + $0xb0] sm:$0xff]
            %v1400 = vld [vmem:[%s1376 + $0xb8] sm:$0xff]
            %v1401 = vld [vmem:[%s1376 + $0xc0] sm:$0xff]
            %v1402 = vld [vmem:[%s1376 + $0xc8] sm:$0xff]
            %v1403 = vld [vmem:[%s1376 + $0xd0] sm:$0xff]
            %v1404 = vld [vmem:[%s1376 + $0xd8] sm:$0xff]
            %v1405 = vld [vmem:[%s1376 + $0xe0] sm:$0xff]
            %v1406 = vld [vmem:[%s1376 + $0xe8] sm:$0xff]
            %v1407 = vld [vmem:[%s1376 + $0xf0] sm:$0xff]
            %v1408 = vld [vmem:[%s1376 + $0xf8] sm:$0xff]
            %v1409 = vadd.f32 %v1377, %v1211
            %v1410 = vadd.f32 %v1378, %v1214
            %v1411 = vadd.f32 %v1379, %v1219
            %v1412 = vadd.f32 %v1380, %v1222
            %v1413 = vadd.f32 %v1381, %v1227
            %v1414 = vadd.f32 %v1382, %v1230
            %v1415 = vadd.f32 %v1383, %v1235
            %v1416 = vadd.f32 %v1384, %v1238
            %v1417 = vadd.f32 %v1385, %v1243
            %v1418 = vadd.f32 %v1386, %v1246
            %v1419 = vadd.f32 %v1387, %v1251
            %v1420 = vadd.f32 %v1388, %v1254
            %v1421 = vadd.f32 %v1389, %v1259
            %v1422 = vadd.f32 %v1390, %v1262
            %v1423 = vadd.f32 %v1391, %v1267
            %v1424 = vadd.f32 %v1392, %v1270
            %v1425 = vadd.f32 %v1393, %v1275
            %v1426 = vadd.f32 %v1394, %v1278
            %v1427 = vadd.f32 %v1395, %v1283
            %v1428 = vadd.f32 %v1396, %v1286
            %v1429 = vadd.f32 %v1397, %v1291
            %v1430 = vadd.f32 %v1398, %v1294
            %v1431 = vadd.f32 %v1399, %v1299
            %v1432 = vadd.f32 %v1400, %v1302
            %v1433 = vadd.f32 %v1401, %v1307
            %v1434 = vadd.f32 %v1402, %v1310
            %v1435 = vadd.f32 %v1403, %v1315
            %v1436 = vadd.f32 %v1404, %v1318
            %v1437 = vadd.f32 %v1405, %v1323
            %v1438 = vadd.f32 %v1406, %v1326
            %v1439 = vadd.f32 %v1407, %v1331
            %v1440 = vadd.f32 %v1408, %v1334
            %s1441 = scalar_lea.vmem [#allocation4], %s169
            %1442 = vst [vmem:[%s1441] sm:$0xff] %v1409
            %1443 = vst [vmem:[%s1441 + $0x8] sm:$0xff] %v1410
            %1444 = vst [vmem:[%s1441 + $0x10] sm:$0xff] %v1411
            %1445 = vst [vmem:[%s1441 + $0x18] sm:$0xff] %v1412
            %1446 = vst [vmem:[%s1441 + $0x20] sm:$0xff] %v1413
            %1447 = vst [vmem:[%s1441 + $0x28] sm:$0xff] %v1414
            %1448 = vst [vmem:[%s1441 + $0x30] sm:$0xff] %v1415
            %1449 = vst [vmem:[%s1441 + $0x38] sm:$0xff] %v1416
            %1450 = vst [vmem:[%s1441 + $0x40] sm:$0xff] %v1417
            %1451 = vst [vmem:[%s1441 + $0x48] sm:$0xff] %v1418
            %1452 = vst [vmem:[%s1441 + $0x50] sm:$0xff] %v1419
            %1453 = vst [vmem:[%s1441 + $0x58] sm:$0xff] %v1420
            %1454 = vst [vmem:[%s1441 + $0x60] sm:$0xff] %v1421
            %1455 = vst [vmem:[%s1441 + $0x68] sm:$0xff] %v1422
            %1456 = vst [vmem:[%s1441 + $0x70] sm:$0xff] %v1423
            %1457 = vst [vmem:[%s1441 + $0x78] sm:$0xff] %v1424
            %1458 = vst [vmem:[%s1441 + $0x80] sm:$0xff] %v1425
            %1459 = vst [vmem:[%s1441 + $0x88] sm:$0xff] %v1426
            %1460 = vst [vmem:[%s1441 + $0x90] sm:$0xff] %v1427
            %1461 = vst [vmem:[%s1441 + $0x98] sm:$0xff] %v1428
            %1462 = vst [vmem:[%s1441 + $0xa0] sm:$0xff] %v1429
            %1463 = vst [vmem:[%s1441 + $0xa8] sm:$0xff] %v1430
            %1464 = vst [vmem:[%s1441 + $0xb0] sm:$0xff] %v1431
            %1465 = vst [vmem:[%s1441 + $0xb8] sm:$0xff] %v1432
            %1466 = vst [vmem:[%s1441 + $0xc0] sm:$0xff] %v1433
            %1467 = vst [vmem:[%s1441 + $0xc8] sm:$0xff] %v1434
            %1468 = vst [vmem:[%s1441 + $0xd0] sm:$0xff] %v1435
            %1469 = vst [vmem:[%s1441 + $0xd8] sm:$0xff] %v1436
            %1470 = vst [vmem:[%s1441 + $0xe0] sm:$0xff] %v1437
            %1471 = vst [vmem:[%s1441 + $0xe8] sm:$0xff] %v1438
            %1472 = vst [vmem:[%s1441 + $0xf0] sm:$0xff] %v1439
            %1473 = vst [vmem:[%s1441 + $0xf8] sm:$0xff] %v1440
          $region64: #{tpu_custom_call.1} parent=59 // pred_fallthru
            _
          %p1474 = scmp.gt.s32.totalorder %s20, 0
          // Predicated region
          $region65: #{tpu_custom_call.1} parent=59 // pred_check
            %p1475 = pneg %p1474
          $region66: #{tpu_custom_call.1} parent=59 // pred_check_branch
            %1477 = sbr.rel (%p1475) target = $region68
          $region67: #{tpu_custom_call.1} parent=59 // pred_region
            %s1478 = scalar_lea.vmem [#allocation4], %s169
            %v1479 = vld [vmem:[%s1478] sm:$0xff]
            %v1480 = vld [vmem:[%s1478 + $0x8] sm:$0xff]
            %v1481 = vld [vmem:[%s1478 + $0x10] sm:$0xff]
            %v1482 = vld [vmem:[%s1478 + $0x18] sm:$0xff]
            %v1483 = vld [vmem:[%s1478 + $0x20] sm:$0xff]
            %v1484 = vld [vmem:[%s1478 + $0x28] sm:$0xff]
            %v1485 = vld [vmem:[%s1478 + $0x30] sm:$0xff]
            %v1486 = vld [vmem:[%s1478 + $0x38] sm:$0xff]
            %v1487 = vld [vmem:[%s1478 + $0x40] sm:$0xff]
            %v1488 = vld [vmem:[%s1478 + $0x48] sm:$0xff]
            %v1489 = vld [vmem:[%s1478 + $0x50] sm:$0xff]
            %v1490 = vld [vmem:[%s1478 + $0x58] sm:$0xff]
            %v1491 = vld [vmem:[%s1478 + $0x60] sm:$0xff]
            %v1492 = vld [vmem:[%s1478 + $0x68] sm:$0xff]
            %v1493 = vld [vmem:[%s1478 + $0x70] sm:$0xff]
            %v1494 = vld [vmem:[%s1478 + $0x78] sm:$0xff]
            %v1495 = vld [vmem:[%s1478 + $0x80] sm:$0xff]
            %v1496 = vld [vmem:[%s1478 + $0x88] sm:$0xff]
            %v1497 = vld [vmem:[%s1478 + $0x90] sm:$0xff]
            %v1498 = vld [vmem:[%s1478 + $0x98] sm:$0xff]
            %v1499 = vld [vmem:[%s1478 + $0xa0] sm:$0xff]
            %v1500 = vld [vmem:[%s1478 + $0xa8] sm:$0xff]
            %v1501 = vld [vmem:[%s1478 + $0xb0] sm:$0xff]
            %v1502 = vld [vmem:[%s1478 + $0xb8] sm:$0xff]
            %v1503 = vld [vmem:[%s1478 + $0xc0] sm:$0xff]
            %v1504 = vld [vmem:[%s1478 + $0xc8] sm:$0xff]
            %v1505 = vld [vmem:[%s1478 + $0xd0] sm:$0xff]
            %v1506 = vld [vmem:[%s1478 + $0xd8] sm:$0xff]
            %v1507 = vld [vmem:[%s1478 + $0xe0] sm:$0xff]
            %v1508 = vld [vmem:[%s1478 + $0xe8] sm:$0xff]
            %v1509 = vld [vmem:[%s1478 + $0xf0] sm:$0xff]
            %v1510 = vld [vmem:[%s1478 + $0xf8] sm:$0xff]
            %v1511 = vadd.f32 %v1479, %v1211
            %v1512 = vadd.f32 %v1480, %v1214
            %v1513 = vadd.f32 %v1481, %v1219
            %v1514 = vadd.f32 %v1482, %v1222
            %v1515 = vadd.f32 %v1483, %v1227
            %v1516 = vadd.f32 %v1484, %v1230
            %v1517 = vadd.f32 %v1485, %v1235
            %v1518 = vadd.f32 %v1486, %v1238
            %v1519 = vadd.f32 %v1487, %v1243
            %v1520 = vadd.f32 %v1488, %v1246
            %v1521 = vadd.f32 %v1489, %v1251
            %v1522 = vadd.f32 %v1490, %v1254
            %v1523 = vadd.f32 %v1491, %v1259
            %v1524 = vadd.f32 %v1492, %v1262
            %v1525 = vadd.f32 %v1493, %v1267
            %v1526 = vadd.f32 %v1494, %v1270
            %v1527 = vadd.f32 %v1495, %v1275
            %v1528 = vadd.f32 %v1496, %v1278
            %v1529 = vadd.f32 %v1497, %v1283
            %v1530 = vadd.f32 %v1498, %v1286
            %v1531 = vadd.f32 %v1499, %v1291
            %v1532 = vadd.f32 %v1500, %v1294
            %v1533 = vadd.f32 %v1501, %v1299
            %v1534 = vadd.f32 %v1502, %v1302
            %v1535 = vadd.f32 %v1503, %v1307
            %v1536 = vadd.f32 %v1504, %v1310
            %v1537 = vadd.f32 %v1505, %v1315
            %v1538 = vadd.f32 %v1506, %v1318
            %v1539 = vadd.f32 %v1507, %v1323
            %v1540 = vadd.f32 %v1508, %v1326
            %v1541 = vadd.f32 %v1509, %v1331
            %v1542 = vadd.f32 %v1510, %v1334
            %1543 = vst [vmem:[%s1478] sm:$0xff] %v1511
            %1544 = vst [vmem:[%s1478 + $0x8] sm:$0xff] %v1512
            %1545 = vst [vmem:[%s1478 + $0x10] sm:$0xff] %v1513
            %1546 = vst [vmem:[%s1478 + $0x18] sm:$0xff] %v1514
            %1547 = vst [vmem:[%s1478 + $0x20] sm:$0xff] %v1515
            %1548 = vst [vmem:[%s1478 + $0x28] sm:$0xff] %v1516
            %1549 = vst [vmem:[%s1478 + $0x30] sm:$0xff] %v1517
            %1550 = vst [vmem:[%s1478 + $0x38] sm:$0xff] %v1518
            %1551 = vst [vmem:[%s1478 + $0x40] sm:$0xff] %v1519
            %1552 = vst [vmem:[%s1478 + $0x48] sm:$0xff] %v1520
            %1553 = vst [vmem:[%s1478 + $0x50] sm:$0xff] %v1521
            %1554 = vst [vmem:[%s1478 + $0x58] sm:$0xff] %v1522
            %1555 = vst [vmem:[%s1478 + $0x60] sm:$0xff] %v1523
            %1556 = vst [vmem:[%s1478 + $0x68] sm:$0xff] %v1524
            %1557 = vst [vmem:[%s1478 + $0x70] sm:$0xff] %v1525
            %1558 = vst [vmem:[%s1478 + $0x78] sm:$0xff] %v1526
            %1559 = vst [vmem:[%s1478 + $0x80] sm:$0xff] %v1527
            %1560 = vst [vmem:[%s1478 + $0x88] sm:$0xff] %v1528
            %1561 = vst [vmem:[%s1478 + $0x90] sm:$0xff] %v1529
            %1562 = vst [vmem:[%s1478 + $0x98] sm:$0xff] %v1530
            %1563 = vst [vmem:[%s1478 + $0xa0] sm:$0xff] %v1531
            %1564 = vst [vmem:[%s1478 + $0xa8] sm:$0xff] %v1532
            %1565 = vst [vmem:[%s1478 + $0xb0] sm:$0xff] %v1533
            %1566 = vst [vmem:[%s1478 + $0xb8] sm:$0xff] %v1534
            %1567 = vst [vmem:[%s1478 + $0xc0] sm:$0xff] %v1535
            %1568 = vst [vmem:[%s1478 + $0xc8] sm:$0xff] %v1536
            %1569 = vst [vmem:[%s1478 + $0xd0] sm:$0xff] %v1537
            %1570 = vst [vmem:[%s1478 + $0xd8] sm:$0xff] %v1538
            %1571 = vst [vmem:[%s1478 + $0xe0] sm:$0xff] %v1539
            %1572 = vst [vmem:[%s1478 + $0xe8] sm:$0xff] %v1540
            %1573 = vst [vmem:[%s1478 + $0xf0] sm:$0xff] %v1541
            %1574 = vst [vmem:[%s1478 + $0xf8] sm:$0xff] %v1542
          $region68: #{tpu_custom_call.1} parent=59 // pred_fallthru
            _
          %p1575 = scmp.eq.s32.totalorder %s20, 1
          // Predicated region
          $region69: #{tpu_custom_call.1} parent=59 // pred_check
            %p1576 = pneg %p1575
          $region70: #{tpu_custom_call.1} parent=59 // pred_check_branch
            %1578 = sbr.rel (%p1576) target = $region72
          $region71: #{tpu_custom_call.1} parent=59 // pred_region
            %s1579 = scalar_lea.vmem [#allocation4], %s169
            %v1580 = vld [vmem:[%s1579] sm:$0xff]
            %v1581 = vld [vmem:[%s1579 + $0x8] sm:$0xff]
            %v1582 = vld [vmem:[%s1579 + $0x10] sm:$0xff]
            %v1583 = vld [vmem:[%s1579 + $0x18] sm:$0xff]
            %v1584 = vld [vmem:[%s1579 + $0x20] sm:$0xff]
            %v1585 = vld [vmem:[%s1579 + $0x28] sm:$0xff]
            %v1586 = vld [vmem:[%s1579 + $0x30] sm:$0xff]
            %v1587 = vld [vmem:[%s1579 + $0x38] sm:$0xff]
            %v1588 = vld [vmem:[%s1579 + $0x40] sm:$0xff]
            %v1589 = vld [vmem:[%s1579 + $0x48] sm:$0xff]
            %v1590 = vld [vmem:[%s1579 + $0x50] sm:$0xff]
            %v1591 = vld [vmem:[%s1579 + $0x58] sm:$0xff]
            %v1592 = vld [vmem:[%s1579 + $0x60] sm:$0xff]
            %v1593 = vld [vmem:[%s1579 + $0x68] sm:$0xff]
            %v1594 = vld [vmem:[%s1579 + $0x70] sm:$0xff]
            %v1595 = vld [vmem:[%s1579 + $0x78] sm:$0xff]
            %v1596 = vld [vmem:[%s1579 + $0x80] sm:$0xff]
            %v1597 = vld [vmem:[%s1579 + $0x88] sm:$0xff]
            %v1598 = vld [vmem:[%s1579 + $0x90] sm:$0xff]
            %v1599 = vld [vmem:[%s1579 + $0x98] sm:$0xff]
            %v1600 = vld [vmem:[%s1579 + $0xa0] sm:$0xff]
            %v1601 = vld [vmem:[%s1579 + $0xa8] sm:$0xff]
            %v1602 = vld [vmem:[%s1579 + $0xb0] sm:$0xff]
            %v1603 = vld [vmem:[%s1579 + $0xb8] sm:$0xff]
            %v1604 = vld [vmem:[%s1579 + $0xc0] sm:$0xff]
            %v1605 = vld [vmem:[%s1579 + $0xc8] sm:$0xff]
            %v1606 = vld [vmem:[%s1579 + $0xd0] sm:$0xff]
            %v1607 = vld [vmem:[%s1579 + $0xd8] sm:$0xff]
            %v1608 = vld [vmem:[%s1579 + $0xe0] sm:$0xff]
            %v1609 = vld [vmem:[%s1579 + $0xe8] sm:$0xff]
            %v1610 = vld [vmem:[%s1579 + $0xf0] sm:$0xff]
            %v1611 = vld [vmem:[%s1579 + $0xf8] sm:$0xff]
            %v1612 = vmul.f32 %v1580, 0.33333334
            %v1613 = vmul.f32 %v1581, 0.33333334
            %v1614 = vmul.f32 %v1582, 0.33333334
            %v1615 = vmul.f32 %v1583, 0.33333334
            %v1616 = vmul.f32 %v1584, 0.33333334
            %v1617 = vmul.f32 %v1585, 0.33333334
            %v1618 = vmul.f32 %v1586, 0.33333334
            %v1619 = vmul.f32 %v1587, 0.33333334
            %v1620 = vmul.f32 %v1588, 0.33333334
            %v1621 = vmul.f32 %v1589, 0.33333334
            %v1622 = vmul.f32 %v1590, 0.33333334
            %v1623 = vmul.f32 %v1591, 0.33333334
            %v1624 = vmul.f32 %v1592, 0.33333334
            %v1625 = vmul.f32 %v1593, 0.33333334
            %v1626 = vmul.f32 %v1594, 0.33333334
            %v1627 = vmul.f32 %v1595, 0.33333334
            %v1628 = vmul.f32 %v1596, 0.33333334
            %v1629 = vmul.f32 %v1597, 0.33333334
            %v1630 = vmul.f32 %v1598, 0.33333334
            %v1631 = vmul.f32 %v1599, 0.33333334
            %v1632 = vmul.f32 %v1600, 0.33333334
            %v1633 = vmul.f32 %v1601, 0.33333334
            %v1634 = vmul.f32 %v1602, 0.33333334
            %v1635 = vmul.f32 %v1603, 0.33333334
            %v1636 = vmul.f32 %v1604, 0.33333334
            %v1637 = vmul.f32 %v1605, 0.33333334
            %v1638 = vmul.f32 %v1606, 0.33333334
            %v1639 = vmul.f32 %v1607, 0.33333334
            %v1640 = vmul.f32 %v1608, 0.33333334
            %v1641 = vmul.f32 %v1609, 0.33333334
            %v1642 = vmul.f32 %v1610, 0.33333334
            %v1643 = vmul.f32 %v1611, 0.33333334
            %1644 = vst [vmem:[#allocation10] sm:$0xff] %v1612
            %1645 = vst [vmem:[#allocation10 + $0x8] sm:$0xff] %v1613
            %1646 = vst [vmem:[#allocation10 + $0x10] sm:$0xff] %v1614
            %1647 = vst [vmem:[#allocation10 + $0x18] sm:$0xff] %v1615
            %1648 = vst [vmem:[#allocation10 + $0x20] sm:$0xff] %v1616
            %1649 = vst [vmem:[#allocation10 + $0x28] sm:$0xff] %v1617
            %1650 = vst [vmem:[#allocation10 + $0x30] sm:$0xff] %v1618
            %1651 = vst [vmem:[#allocation10 + $0x38] sm:$0xff] %v1619
            %1652 = vst [vmem:[#allocation10 + $0x40] sm:$0xff] %v1620
            %1653 = vst [vmem:[#allocation10 + $0x48] sm:$0xff] %v1621
            %1654 = vst [vmem:[#allocation10 + $0x50] sm:$0xff] %v1622
            %1655 = vst [vmem:[#allocation10 + $0x58] sm:$0xff] %v1623
            %1656 = vst [vmem:[#allocation10 + $0x60] sm:$0xff] %v1624
            %1657 = vst [vmem:[#allocation10 + $0x68] sm:$0xff] %v1625
            %1658 = vst [vmem:[#allocation10 + $0x70] sm:$0xff] %v1626
            %1659 = vst [vmem:[#allocation10 + $0x78] sm:$0xff] %v1627
            %1660 = vst [vmem:[#allocation10 + $0x80] sm:$0xff] %v1628
            %1661 = vst [vmem:[#allocation10 + $0x88] sm:$0xff] %v1629
            %1662 = vst [vmem:[#allocation10 + $0x90] sm:$0xff] %v1630
            %1663 = vst [vmem:[#allocation10 + $0x98] sm:$0xff] %v1631
            %1664 = vst [vmem:[#allocation10 + $0xa0] sm:$0xff] %v1632
            %1665 = vst [vmem:[#allocation10 + $0xa8] sm:$0xff] %v1633
            %1666 = vst [vmem:[#allocation10 + $0xb0] sm:$0xff] %v1634
            %1667 = vst [vmem:[#allocation10 + $0xb8] sm:$0xff] %v1635
            %1668 = vst [vmem:[#allocation10 + $0xc0] sm:$0xff] %v1636
            %1669 = vst [vmem:[#allocation10 + $0xc8] sm:$0xff] %v1637
            %1670 = vst [vmem:[#allocation10 + $0xd0] sm:$0xff] %v1638
            %1671 = vst [vmem:[#allocation10 + $0xd8] sm:$0xff] %v1639
            %1672 = vst [vmem:[#allocation10 + $0xe0] sm:$0xff] %v1640
            %1673 = vst [vmem:[#allocation10 + $0xe8] sm:$0xff] %v1641
            %1674 = vst [vmem:[#allocation10 + $0xf0] sm:$0xff] %v1642
            %1675 = vst [vmem:[#allocation10 + $0xf8] sm:$0xff] %v1643
          $region72: #{tpu_custom_call.1} parent=59 // pred_fallthru
            _
        $region60: #{tpu_custom_call.1} parent=27 // pred_fallthru
          _
        // Predicated region
        $region73: #{tpu_custom_call.1} parent=27 // pred_check
          %p1676 = pneg %p93
        $region74: #{tpu_custom_call.1} parent=27 // pred_check_branch
          %1678 = sbr.rel (%p1676) target = $region76
        $region75: #{tpu_custom_call.1} parent=27 // pred_region
          %s1679 = smul.u32 32, %s21
          %s1681 = ssub.s32 4096, 4096
          %1682 = vsyncadd [#allocation7], %s1681
          %s1683 = smul.addr %s1679, 128
          %s1684 = scalar_lea.hbm %s2, %s1683
          %s1685 = sshll.u32 [#allocation10], 4
          %s1686 = int_to_ptr.vmem [resolvable:$true] %s1685
          %1691 = dma.vmem_to_hbm [thread:$0]  %s1686, 4096, %s1684, [#allocation7], 128, 128, 8
        $region76: #{tpu_custom_call.1} parent=27 // pred_fallthru
          _
        // Predicated region
        $region77: #{tpu_custom_call.1} parent=27 // pred_check
          %p1692 = pneg %p93
        $region78: #{tpu_custom_call.1} parent=27 // pred_check_branch
          %1694 = sbr.rel (%p1692) target = $region80
        $region79: #{tpu_custom_call.1} parent=27 // pred_region
          %1695 = dma.done [#allocation7], 4096
        $region80: #{tpu_custom_call.1} parent=27 // pred_fallthru
          _
      $region28: #{tpu_custom_call.1} parent=5 // pred_fallthru
        _
      %p1696 = scmp.le.s32.totalorder 2, %s11
      // Predicated region
      $region81: #{tpu_custom_call.1} parent=5 // pred_check
        %p1697 = pneg %p1696
      $region82: #{tpu_custom_call.1} parent=5 // pred_check_branch
        %1699 = sbr.rel (%p1697) target = $region84
      $region83: #{tpu_custom_call.1} parent=5 // pred_region
        %s1700 = ssub.s32 %s11, 2
      $region84: #{tpu_custom_call.1} parent=5 // pred_fallthru
        _
    $region6: #{tpu_custom_call.1} parent=1 // loop_footer
      %s15 = sadd.s32 1, %s11
    $region7: #{tpu_custom_call.1} parent=1 // loop_footer_branch
      %10 = sbr.rel target = $region3
    $region8: #{tpu_custom_call.1} parent=1 // loop_exit
      _
    %1701 = vsyncpa [#allocation6], 1
    %s1702 = scalar_lea.sflag [#allocation6], 1
    %1703 = vsyncpa %s1702, 1
    %1704 = vsyncpa [#allocation9], 1
    %1705 = vsyncpa [#allocation7], 1
    %s1706 = scalar_lea.sflag [#allocation7], 1
    %1707 = vsyncpa %s1706, 1

</llo_original>
